<compile_context>
chip_gen: v7x
topology: tpu7x:2x2x1
jax: 0.10.0
libtpu: 0.0.40
codegen_flags: <defaults>
</compile_context>

<pallas_src>
import functools

import jax
import jax.numpy as jnp
import numpy as np
from jax.experimental import pallas as pl
from jax.experimental.pallas import tpu as pltpu

F32 = jnp.float32
BF16 = jnp.bfloat16
LN_EPS = 1e-5


def _layernorm(z, g, b):
    mu = jnp.mean(z, axis=-1, keepdims=True)
    var = jnp.mean((z - mu) ** 2, axis=-1, keepdims=True)
    return (z - mu) * jax.lax.rsqrt(var + LN_EPS) * g + b


def decoder_layer_kernel(
    xq_ref, xkv_ref, mask_ref,
    g1_ref, be1_ref, g2_ref, be2_ref,
    wq_ref, bq_ref, wkv_ref, bkv_ref,
    wo_ref, bo_ref, w1_ref, b1_ref, w2_ref, b2_ref,
    out_ref,
    kv_ref, ctx_ref,
    *, n_heads, head_dim,
):
    E = n_heads * head_dim

    g1 = g1_ref[...]
    be1 = be1_ref[...]

    # ---- K/V projection: computed once per batch element (first query tile only),
    #      cached in VMEM scratch and reused by every other query tile of this b. ----
    @pl.when(pl.program_id(1) == 0)
    def _():
        xn_kv = _layernorm(xkv_ref[0].astype(F32), g1, be1)          # (S, E) f32
        kv = jnp.dot(xn_kv.astype(BF16), wkv_ref[...],
                     preferred_element_type=F32) + bkv_ref[...]      # (S, 2E) f32
        kv_ref[...] = kv.astype(BF16)

    # ---- Q projection for this tile (1/sqrt(head_dim) scale pre-folded into wq/bq). ----
    x_q = xq_ref[0].astype(F32)                                      # (TQ, E) residual rows
    xn_q = _layernorm(x_q, g1, be1)
    q = jnp.dot(xn_q.astype(BF16), wq_ref[...],
                preferred_element_type=F32) + bq_ref[...]            # (TQ, E) f32
    q = q.astype(BF16)

    # Additive key-padding bias, computed once and shared by all heads.
    key_bias = jnp.where(mask_ref[0] == 0.0, F32(-1e9), F32(0.0))    # (1, S)

    # ---- Attention: per-head score / context matmuls on static lane slices of the
    #      fused Q / KV blocks; only one (TQ, S) score block live at a time; softmax
    #      normalization deferred to the (TQ, hd) context (EUP reciprocal). ----
    for h in range(n_heads):
        lo = h * head_dim
        hi = lo + head_dim
        q_h = q[:, lo:hi]                                            # (TQ, hd) bf16
        k_h = kv_ref[:, lo:hi]                                       # (S, hd)  bf16
        v_h = kv_ref[:, E + lo:E + hi]                               # (S, hd)  bf16
        s = jax.lax.dot_general(q_h, k_h, (((1,), (1,)), ((), ())),
                                preferred_element_type=F32) + key_bias   # (TQ, S)
        m = jnp.max(s, axis=-1, keepdims=True)
        p = jnp.exp(s - m)
        l = jnp.sum(p, axis=-1, keepdims=True)
        c = jnp.dot(p.astype(BF16), v_h, preferred_element_type=F32)     # (TQ, hd)
        ctx_ref[:, lo:hi] = c * pl.reciprocal(l, approx=True)

    # ---- Output projection: one full-width (E, E) matmul over the assembled context. ----
    attn = jnp.dot(ctx_ref[...].astype(BF16), wo_ref[...],
                   preferred_element_type=F32) + bo_ref[...]
    res = x_q + attn                                                  # residual 1 (f32)

    # ---- Feed-forward + residual 2. ----
    rn = _layernorm(res, g2_ref[...], be2_ref[...])
    h1 = jnp.maximum(
        jnp.dot(rn.astype(BF16), w1_ref[...], preferred_element_type=F32) + b1_ref[...],
        0.0)
    ff = jnp.dot(h1.astype(BF16), w2_ref[...], preferred_element_type=F32) + b2_ref[...]

    out_ref[0] = (res + ff).astype(out_ref.dtype)


def decoder_layer(x, mask, kparams, *, n_heads, q_tile=256):
    # NOTE: on v7x (64 MiB VMEM) prefer q_tile=128 / a KV grid axis at long S.
    B, S, E = x.shape
    head_dim = E // n_heads
    F_dim = kparams["w1"].shape[1]
    TQ = min(S, q_tile)
    NQ = pl.cdiv(S, TQ)

    mask3 = mask.reshape(B, 1, S)

    weight_order = ["g1", "be1", "g2", "be2",
                    "wq", "bq", "wkv", "bkv",
                    "wo", "bo", "w1", "b1", "w2", "b2"]
    weight_args = [kparams[n] for n in weight_order]

    def const_spec(arr):
        nd = arr.ndim
        return pl.BlockSpec(arr.shape, lambda b, q, _n=nd: (0,) * _n)

    kernel = functools.partial(decoder_layer_kernel,
                               n_heads=n_heads, head_dim=head_dim)

    # Advisory cost estimate so XLA can overlap neighbouring ops with this call.
    flops = B * (8 * S * E * E + 4 * S * S * E + 4 * S * E * F_dim)
    transcendentals = B * n_heads * S * S
    weight_bytes = sum(int(np.prod(a.shape)) * int(a.dtype.itemsize) for a in weight_args)
    bytes_accessed = (3 * int(x.size) * int(x.dtype.itemsize)     # x (q tiles + kv) + out
                      + int(mask.size) * 4 + weight_bytes)
    cost = pl.CostEstimate(flops=int(flops),
                           transcendentals=int(transcendentals),
                           bytes_accessed=int(bytes_accessed))

    return pl.pallas_call(
        kernel,
        out_shape=jax.ShapeDtypeStruct((B, S, E), x.dtype),
        grid_spec=pltpu.PrefetchScalarGridSpec(
            num_scalar_prefetch=0,
            grid=(B, NQ),
            in_specs=[
                pl.BlockSpec((1, TQ, E), lambda b, q: (b, q, 0)),   # x: query tile
                pl.BlockSpec((1, S, E), lambda b, q: (b, 0, 0)),    # x: full seq (K/V @ q==0)
                pl.BlockSpec((1, 1, S), lambda b, q: (b, 0, 0)),    # key-padding mask
            ] + [const_spec(a) for a in weight_args],
            out_specs=pl.BlockSpec((1, TQ, E), lambda b, q: (b, q, 0)),
            scratch_shapes=[
                pltpu.VMEM((S, 2 * E), BF16),    # cached K|V, persists across q tiles
                pltpu.VMEM((TQ, E), F32),        # assembled per-tile attention context
            ],
        ),
        # Batch axis parallel (v7x megacore split); q axis arbitrary so the KV scratch is
        # computed once per b and reused sequentially across its query tiles.
        compiler_params=pltpu.CompilerParams(
            dimension_semantics=("parallel", "arbitrary"),
            vmem_limit_bytes=32 * 1024 * 1024,   # explicit scoped-VMEM budget (review item)
        ),
        cost_estimate=cost,
    )(x, x, mask3, *weight_args)


def make_params(key, E, F, H):
    """Per-head parameters mirroring the PyTorch module layout (all f32, (in, out) weights)."""
    hd = E // H
    ks = jax.random.split(key, 10)
    scale = 0.05
    return {
        "g1": jnp.ones((E,), F32), "be1": jnp.zeros((E,), F32),
        "g2": jnp.ones((E,), F32), "be2": jnp.zeros((E,), F32),
        "wq": scale * jax.random.normal(ks[0], (H, E, hd), F32),
        "bq": scale * jax.random.normal(ks[1], (H, hd), F32),
        "wk": scale * jax.random.normal(ks[2], (H, E, hd), F32),
        "bk": scale * jax.random.normal(ks[3], (H, hd), F32),
        "wv": scale * jax.random.normal(ks[4], (H, E, hd), F32),
        "bv": scale * jax.random.normal(ks[5], (H, hd), F32),
        "wo": scale * jax.random.normal(ks[6], (E, E), F32),
        "bo": scale * jax.random.normal(ks[7], (E,), F32),
        "w1": scale * jax.random.normal(ks[8], (E, F), F32),
        "b1": jnp.zeros((F,), F32),
        "w2": scale * jax.random.normal(ks[9], (F, E), F32),
        "b2": jnp.zeros((E,), F32),
    }


def prepare_kernel_params(p, H):
    """Host-side fusion of per-head weights into full-width matmul operands.

    Q heads are concatenated into one (E, E) matrix with the 1/sqrt(head_dim) attention
    scale folded into weight + bias; K and V heads are concatenated into one (E, 2E)
    matrix. Matmul weights are stored bf16 (f32 accumulation in-kernel); LN/bias stay f32.
    """
    hd = p["wq"].shape[-1]
    s = 1.0 / (hd ** 0.5)
    wq = jnp.concatenate([p["wq"][h] for h in range(H)], axis=1)      # (E, E)
    bq = jnp.concatenate([p["bq"][h] for h in range(H)], axis=0)      # (E,)
    wk = jnp.concatenate([p["wk"][h] for h in range(H)], axis=1)
    bk = jnp.concatenate([p["bk"][h] for h in range(H)], axis=0)
    wv = jnp.concatenate([p["wv"][h] for h in range(H)], axis=1)
    bv = jnp.concatenate([p["bv"][h] for h in range(H)], axis=0)
    return {
        "g1": p["g1"][None], "be1": p["be1"][None],
        "g2": p["g2"][None], "be2": p["be2"][None],
        "wq": (wq * s).astype(BF16), "bq": (bq * s)[None].astype(F32),
        "wkv": jnp.concatenate([wk, wv], axis=1).astype(BF16),        # (E, 2E)
        "bkv": jnp.concatenate([bk, bv], axis=0)[None].astype(F32),   # (1, 2E)
        "wo": p["wo"].astype(BF16), "bo": p["bo"][None].astype(F32),
        "w1": p["w1"].astype(BF16), "b1": p["b1"][None].astype(F32),
        "w2": p["w2"].astype(BF16), "b2": p["b2"][None].astype(F32),
    }


def reference(x, mask, p, n_heads):
    """Pure-JAX f32 reference mirroring the PyTorch forward (dropout = identity)."""
    eps = 1e-5
    E = x.shape[-1]
    hd = E // n_heads

    def ln(z, g, b):
        mu = jnp.mean(z, -1, keepdims=True)
        var = jnp.mean((z - mu) ** 2, -1, keepdims=True)
        return (z - mu) / jnp.sqrt(var + eps) * g + b

    xn = ln(x, p["g1"], p["be1"])
    heads = []
    for h in range(n_heads):
        q = xn @ p["wq"][h] + p["bq"][h]
        k = xn @ p["wk"][h] + p["bk"][h]
        v = xn @ p["wv"][h] + p["bv"][h]
        sc = jnp.einsum("bqd,bkd->bqk", q, k) / (hd ** 0.5)
        sc = jnp.where((mask == 0)[:, None, :], -1e9, sc)
        heads.append(jnp.einsum("bqk,bkd->bqd", jax.nn.softmax(sc, axis=-1), v))
    attn = jnp.concatenate(heads, axis=-1) @ p["wo"] + p["bo"]
    res = x + attn
    rn = ln(res, p["g2"], p["be2"])
    ff = jnp.maximum(rn @ p["w1"] + p["b1"], 0.0) @ p["w2"] + p["b2"]
    return res + ff


if __name__ == "__main__":
    B, S, E, H, F_dim = 2, 8, 32, 4, 64
    key = jax.random.PRNGKey(0)
    kx, km, kp = jax.random.split(key, 3)
    x = jax.random.normal(kx, (B, S, E), jnp.float32)
    mask = (jax.random.uniform(km, (B, S)) > 0.2).astype(jnp.float32)
    mask = mask.at[:, 0].set(1.0)  # ensure at least one unmasked key per row
    params = make_params(kp, E, F_dim, H)
    kparams = prepare_kernel_params(params, H)

    out = decoder_layer(x, mask, kparams, n_heads=H)
    out = jax.block_until_ready(out)

    ref = reference(x, mask, params, H)
    # Kernel uses bf16 matmul operands (f32 accumulation) and an approx EUP reciprocal in
    # the softmax normalization, so the comparison tolerance is loosened accordingly.
    np.testing.assert_allclose(np.asarray(out, dtype=np.float32), np.asarray(ref),
                               rtol=2e-2, atol=2e-2)
    print("KERNEL_OK")
</pallas_src>

<mosaic_0001>
module attributes {stable_mosaic.version = 11 : i64} {
  func.func @decoder_layer_kernel(%arg0: i32, %arg1: i32, %arg2: memref<1x8x32xf32, #tpu.memory_space<vmem>>, %arg3: memref<1x8x32xf32, #tpu.memory_space<vmem>>, %arg4: memref<1x1x8xf32, #tpu.memory_space<vmem>>, %arg5: memref<1x32xf32, #tpu.memory_space<vmem>>, %arg6: memref<1x32xf32, #tpu.memory_space<vmem>>, %arg7: memref<1x32xf32, #tpu.memory_space<vmem>>, %arg8: memref<1x32xf32, #tpu.memory_space<vmem>>, %arg9: memref<32x32xbf16, #tpu.memory_space<vmem>>, %arg10: memref<1x32xf32, #tpu.memory_space<vmem>>, %arg11: memref<32x64xbf16, #tpu.memory_space<vmem>>, %arg12: memref<1x64xf32, #tpu.memory_space<vmem>>, %arg13: memref<32x32xbf16, #tpu.memory_space<vmem>>, %arg14: memref<1x32xf32, #tpu.memory_space<vmem>>, %arg15: memref<32x64xbf16, #tpu.memory_space<vmem>>, %arg16: memref<1x64xf32, #tpu.memory_space<vmem>>, %arg17: memref<64x32xbf16, #tpu.memory_space<vmem>>, %arg18: memref<1x32xf32, #tpu.memory_space<vmem>>, %arg19: memref<1x8x32xf32, #tpu.memory_space<vmem>>, %arg20: memref<8x64xbf16, #tpu.memory_space<vmem>>, %arg21: memref<8x32xf32, #tpu.memory_space<vmem>>) attributes {dimension_semantics = [#tpu.dimension_semantics<parallel>, #tpu.dimension_semantics<arbitrary>], iteration_bounds = array<i64: 2, 1>, scalar_prefetch = 0 : i64, scratch_operands = 2 : i64, tpu.core_type = #tpu.core_type<tc>, window_params = [{transform_indices = @transform_0, window_bounds = array<i64: 1, 8, 32>}, {transform_indices = @transform_1, window_bounds = array<i64: 1, 8, 32>}, {transform_indices = @transform_2, window_bounds = array<i64: 1, 1, 8>}, {pipeline_mode = #tpu.pipeline_mode<synchronous>, transform_indices = @transform_3, window_bounds = array<i64: 1, 32>}, {pipeline_mode = #tpu.pipeline_mode<synchronous>, transform_indices = @transform_4, window_bounds = array<i64: 1, 32>}, {pipeline_mode = #tpu.pipeline_mode<synchronous>, transform_indices = @transform_5, window_bounds = array<i64: 1, 32>}, {pipeline_mode = #tpu.pipeline_mode<synchronous>, transform_indices = @transform_6, window_bounds = array<i64: 1, 32>}, {pipeline_mode = #tpu.pipeline_mode<synchronous>, transform_indices = @transform_7, window_bounds = array<i64: 32, 32>}, {pipeline_mode = #tpu.pipeline_mode<synchronous>, transform_indices = @transform_8, window_bounds = array<i64: 1, 32>}, {pipeline_mode = #tpu.pipeline_mode<synchronous>, transform_indices = @transform_9, window_bounds = array<i64: 32, 64>}, {pipeline_mode = #tpu.pipeline_mode<synchronous>, transform_indices = @transform_10, window_bounds = array<i64: 1, 64>}, {pipeline_mode = #tpu.pipeline_mode<synchronous>, transform_indices = @transform_11, window_bounds = array<i64: 32, 32>}, {pipeline_mode = #tpu.pipeline_mode<synchronous>, transform_indices = @transform_12, window_bounds = array<i64: 1, 32>}, {pipeline_mode = #tpu.pipeline_mode<synchronous>, transform_indices = @transform_13, window_bounds = array<i64: 32, 64>}, {pipeline_mode = #tpu.pipeline_mode<synchronous>, transform_indices = @transform_14, window_bounds = array<i64: 1, 64>}, {pipeline_mode = #tpu.pipeline_mode<synchronous>, transform_indices = @transform_15, window_bounds = array<i64: 64, 32>}, {pipeline_mode = #tpu.pipeline_mode<synchronous>, transform_indices = @transform_16, window_bounds = array<i64: 1, 32>}, {transform_indices = @transform_17, window_bounds = array<i64: 1, 8, 32>}]} {
    %c0 = arith.constant 0 : index
    %c0_0 = arith.constant 0 : index
    %0 = vector.load %arg5[%c0, %c0_0] : memref<1x32xf32, #tpu.memory_space<vmem>>, vector<1x32xf32>
    %c0_1 = arith.constant 0 : index
    %c0_2 = arith.constant 0 : index
    %1 = vector.load %arg6[%c0_1, %c0_2] : memref<1x32xf32, #tpu.memory_space<vmem>>, vector<1x32xf32>
    %c0_i32 = arith.constant 0 : i32
    %2 = arith.cmpi eq, %arg1, %c0_i32 : i32
    %3 = arith.extui %2 : i1 to i32
    %c0_i32_3 = arith.constant 0 : i32
    %4 = arith.cmpi ne, %3, %c0_i32_3 : i32
    scf.if %4 {
      %c0_85 = arith.constant 0 : index
      %c0_86 = arith.constant 0 : index
      %c0_87 = arith.constant 0 : index
      %169 = vector.load %arg3[%c0_85, %c0_86, %c0_87] : memref<1x8x32xf32, #tpu.memory_space<vmem>>, vector<1x8x32xf32>
      %170 = vector.shape_cast %169 : vector<1x8x32xf32> to vector<8x32xf32>
      %cst_88 = arith.constant dense<0.000000e+00> : vector<8xf32>
      %171 = vector.multi_reduction <add>, %170, %cst_88 [1] : vector<8x32xf32> to vector<8xf32>
      %172 = vector.shape_cast %171 : vector<8xf32> to vector<8x1xf32>
      %cst_89 = arith.constant 3.200000e+01 : f32
      %173 = vector.broadcast %cst_89 : f32 to vector<8x1xf32>
      %174 = arith.divf %172, %173 : vector<8x1xf32>
      %175 = vector.broadcast %174 : vector<8x1xf32> to vector<8x32xf32>
      %176 = arith.subf %170, %175 : vector<8x32xf32>
      %177 = arith.mulf %176, %176 : vector<8x32xf32>
      %cst_90 = arith.constant dense<0.000000e+00> : vector<8xf32>
      %178 = vector.multi_reduction <add>, %177, %cst_90 [1] : vector<8x32xf32> to vector<8xf32>
      %179 = vector.shape_cast %178 : vector<8xf32> to vector<8x1xf32>
      %cst_91 = arith.constant 3.200000e+01 : f32
      %180 = vector.broadcast %cst_91 : f32 to vector<8x1xf32>
      %181 = arith.divf %179, %180 : vector<8x1xf32>
      %182 = vector.broadcast %174 : vector<8x1xf32> to vector<8x32xf32>
      %183 = arith.subf %170, %182 : vector<8x32xf32>
      %cst_92 = arith.constant 9.99999974E-6 : f32
      %184 = vector.broadcast %cst_92 : f32 to vector<8x1xf32>
      %185 = arith.addf %181, %184 : vector<8x1xf32>
      %186 = math.rsqrt %185 : vector<8x1xf32>
      %187 = vector.broadcast %186 : vector<8x1xf32> to vector<8x32xf32>
      %188 = arith.mulf %183, %187 : vector<8x32xf32>
      %189 = vector.broadcast %0 : vector<1x32xf32> to vector<8x32xf32>
      %190 = arith.mulf %188, %189 : vector<8x32xf32>
      %191 = vector.broadcast %1 : vector<1x32xf32> to vector<8x32xf32>
      %192 = arith.addf %190, %191 : vector<8x32xf32>
      %193 = arith.truncf %192 : vector<8x32xf32> to vector<8x32xbf16>
      %c0_93 = arith.constant 0 : index
      %c0_94 = arith.constant 0 : index
      %194 = vector.load %arg11[%c0_93, %c0_94] : memref<32x64xbf16, #tpu.memory_space<vmem>>, vector<32x64xbf16>
      %cst_95 = arith.constant dense<0.000000e+00> : vector<8x64xf32>
      %195 = tpu.matmul %193, %194, %cst_95 {dimension_numbers = #tpu.dot_dimension_numbers<[1], [0], [0], [1], [0, 0, 1, 1], [], []>} : vector<8x32xbf16>, vector<32x64xbf16>, vector<8x64xf32> -> vector<8x64xf32>
      %c0_96 = arith.constant 0 : index
      %c0_97 = arith.constant 0 : index
      %196 = vector.load %arg12[%c0_96, %c0_97] : memref<1x64xf32, #tpu.memory_space<vmem>>, vector<1x64xf32>
      %197 = vector.broadcast %196 : vector<1x64xf32> to vector<8x64xf32>
      %198 = arith.addf %195, %197 : vector<8x64xf32>
      %199 = arith.truncf %198 : vector<8x64xf32> to vector<8x64xbf16>
      %c0_98 = arith.constant 0 : index
      %c0_99 = arith.constant 0 : index
      %200 = vector.load %arg20[%c0_98, %c0_99] : memref<8x64xbf16, #tpu.memory_space<vmem>>, vector<8x64xbf16>
      tpu.vector_store %arg20[%c0_98, %c0_99], %199 {strides = array<i32>} : memref<8x64xbf16, #tpu.memory_space<vmem>>, vector<8x64xbf16>,
    } else {
    }
    %c0_4 = arith.constant 0 : index
    %c0_5 = arith.constant 0 : index
    %c0_6 = arith.constant 0 : index
    %5 = vector.load %arg2[%c0_4, %c0_5, %c0_6] : memref<1x8x32xf32, #tpu.memory_space<vmem>>, vector<1x8x32xf32>
    %6 = vector.shape_cast %5 : vector<1x8x32xf32> to vector<8x32xf32>
    %cst = arith.constant dense<0.000000e+00> : vector<8xf32>
    %7 = vector.multi_reduction <add>, %6, %cst [1] : vector<8x32xf32> to vector<8xf32>
    %8 = vector.shape_cast %7 : vector<8xf32> to vector<8x1xf32>
    %cst_7 = arith.constant 3.200000e+01 : f32
    %9 = vector.broadcast %cst_7 : f32 to vector<8x1xf32>
    %10 = arith.divf %8, %9 : vector<8x1xf32>
    %11 = vector.broadcast %10 : vector<8x1xf32> to vector<8x32xf32>
    %12 = arith.subf %6, %11 : vector<8x32xf32>
    %13 = arith.mulf %12, %12 : vector<8x32xf32>
    %cst_8 = arith.constant dense<0.000000e+00> : vector<8xf32>
    %14 = vector.multi_reduction <add>, %13, %cst_8 [1] : vector<8x32xf32> to vector<8xf32>
    %15 = vector.shape_cast %14 : vector<8xf32> to vector<8x1xf32>
    %cst_9 = arith.constant 3.200000e+01 : f32
    %16 = vector.broadcast %cst_9 : f32 to vector<8x1xf32>
    %17 = arith.divf %15, %16 : vector<8x1xf32>
    %18 = vector.broadcast %10 : vector<8x1xf32> to vector<8x32xf32>
    %19 = arith.subf %6, %18 : vector<8x32xf32>
    %cst_10 = arith.constant 9.99999974E-6 : f32
    %20 = vector.broadcast %cst_10 : f32 to vector<8x1xf32>
    %21 = arith.addf %17, %20 : vector<8x1xf32>
    %22 = math.rsqrt %21 : vector<8x1xf32>
    %23 = vector.broadcast %22 : vector<8x1xf32> to vector<8x32xf32>
    %24 = arith.mulf %19, %23 : vector<8x32xf32>
    %25 = vector.broadcast %0 : vector<1x32xf32> to vector<8x32xf32>
    %26 = arith.mulf %24, %25 : vector<8x32xf32>
    %27 = vector.broadcast %1 : vector<1x32xf32> to vector<8x32xf32>
    %28 = arith.addf %26, %27 : vector<8x32xf32>
    %29 = arith.truncf %28 : vector<8x32xf32> to vector<8x32xbf16>
    %c0_11 = arith.constant 0 : index
    %c0_12 = arith.constant 0 : index
    %30 = vector.load %arg9[%c0_11, %c0_12] : memref<32x32xbf16, #tpu.memory_space<vmem>>, vector<32x32xbf16>
    %cst_13 = arith.constant dense<0.000000e+00> : vector<8x32xf32>
    %31 = tpu.matmul %29, %30, %cst_13 {dimension_numbers = #tpu.dot_dimension_numbers<[1], [0], [0], [1], [0, 0, 1, 1], [], []>} : vector<8x32xbf16>, vector<32x32xbf16>, vector<8x32xf32> -> vector<8x32xf32>
    %c0_14 = arith.constant 0 : index
    %c0_15 = arith.constant 0 : index
    %32 = vector.load %arg10[%c0_14, %c0_15] : memref<1x32xf32, #tpu.memory_space<vmem>>, vector<1x32xf32>
    %33 = vector.broadcast %32 : vector<1x32xf32> to vector<8x32xf32>
    %34 = arith.addf %31, %33 : vector<8x32xf32>
    %35 = arith.truncf %34 : vector<8x32xf32> to vector<8x32xbf16>
    %c0_16 = arith.constant 0 : index
    %c0_17 = arith.constant 0 : index
    %c0_18 = arith.constant 0 : index
    %36 = vector.load %arg4[%c0_16, %c0_17, %c0_18] : memref<1x1x8xf32, #tpu.memory_space<vmem>>, vector<1x1x8xf32>
    %37 = vector.shape_cast %36 : vector<1x1x8xf32> to vector<1x8xf32>
    %cst_19 = arith.constant 0.000000e+00 : f32
    %38 = vector.broadcast %cst_19 : f32 to vector<1x8xf32>
    %39 = arith.cmpf oeq, %37, %38 : vector<1x8xf32>
    %cst_20 = arith.constant -1.000000e+09 : f32
    %cst_21 = arith.constant 0.000000e+00 : f32
    %40 = vector.broadcast %cst_20 : f32 to vector<1x8xf32>
    %41 = vector.broadcast %cst_21 : f32 to vector<1x8xf32>
    %42 = arith.select %39, %40, %41 : vector<1x8xi1>, vector<1x8xf32>
    %43 = vector.extract_strided_slice %35 {offsets = [0, 0], sizes = [8, 8], strides = [1, 1]} : vector<8x32xbf16> to vector<8x8xbf16>
    %c0_22 = arith.constant 0 : index
    %c0_23 = arith.constant 0 : index
    %44 = vector.load %arg20[%c0_22, %c0_23] : memref<8x64xbf16, #tpu.memory_space<vmem>>, vector<8x8xbf16>
    %c0_24 = arith.constant 0 : index
    %c32 = arith.constant 32 : index
    %45 = vector.load %arg20[%c0_24, %c32] : memref<8x64xbf16, #tpu.memory_space<vmem>>, vector<8x8xbf16>
    %cst_25 = arith.constant dense<0.000000e+00> : vector<8x8xf32>
    %46 = tpu.matmul %43, %44, %cst_25 {dimension_numbers = #tpu.dot_dimension_numbers<[1], [1], [0], [0], [0, 0, 1, 0], [], []>} : vector<8x8xbf16>, vector<8x8xbf16>, vector<8x8xf32> -> vector<8x8xf32>
    %47 = vector.broadcast %42 : vector<1x8xf32> to vector<8x8xf32>
    %48 = arith.addf %46, %47 : vector<8x8xf32>
    %cst_26 = arith.constant dense<0xFF800000> : vector<8xf32>
    %49 = vector.multi_reduction <maximumf>, %48, %cst_26 [1] : vector<8x8xf32> to vector<8xf32>
    %50 = vector.shape_cast %49 : vector<8xf32> to vector<8x1xf32>
    %51 = vector.broadcast %50 : vector<8x1xf32> to vector<8x8xf32>
    %52 = arith.subf %48, %51 : vector<8x8xf32>
    %53 = math.exp %52 : vector<8x8xf32>
    %cst_27 = arith.constant dense<0.000000e+00> : vector<8xf32>
    %54 = vector.multi_reduction <add>, %53, %cst_27 [1] : vector<8x8xf32> to vector<8xf32>
    %55 = vector.shape_cast %54 : vector<8xf32> to vector<8x1xf32>
    %56 = arith.truncf %53 : vector<8x8xf32> to vector<8x8xbf16>
    %cst_28 = arith.constant dense<0.000000e+00> : vector<8x8xf32>
    %57 = tpu.matmul %56, %45, %cst_28 {dimension_numbers = #tpu.dot_dimension_numbers<[1], [0], [0], [1], [0, 0, 1, 1], [], []>} : vector<8x8xbf16>, vector<8x8xbf16>, vector<8x8xf32> -> vector<8x8xf32>
    %58 = tpu.reciprocal %55 {approx = true} : vector<8x1xf32> -> vector<8x1xf32>
    %59 = vector.broadcast %58 : vector<8x1xf32> to vector<8x8xf32>
    %60 = arith.mulf %57, %59 : vector<8x8xf32>
    %c0_29 = arith.constant 0 : index
    %c0_30 = arith.constant 0 : index
    %61 = vector.load %arg21[%c0_29, %c0_30] : memref<8x32xf32, #tpu.memory_space<vmem>>, vector<8x8xf32>
    tpu.vector_store %arg21[%c0_29, %c0_30], %60 {strides = array<i32>} : memref<8x32xf32, #tpu.memory_space<vmem>>, vector<8x8xf32>,
    %62 = vector.extract_strided_slice %35 {offsets = [0, 8], sizes = [8, 8], strides = [1, 1]} : vector<8x32xbf16> to vector<8x8xbf16>
    %c0_31 = arith.constant 0 : index
    %c8 = arith.constant 8 : index
    %63 = vector.load %arg20[%c0_31, %c8] : memref<8x64xbf16, #tpu.memory_space<vmem>>, vector<8x8xbf16>
    %c0_32 = arith.constant 0 : index
    %c40 = arith.constant 40 : index
    %64 = vector.load %arg20[%c0_32, %c40] : memref<8x64xbf16, #tpu.memory_space<vmem>>, vector<8x8xbf16>
    %cst_33 = arith.constant dense<0.000000e+00> : vector<8x8xf32>
    %65 = tpu.matmul %62, %63, %cst_33 {dimension_numbers = #tpu.dot_dimension_numbers<[1], [1], [0], [0], [0, 0, 1, 0], [], []>} : vector<8x8xbf16>, vector<8x8xbf16>, vector<8x8xf32> -> vector<8x8xf32>
    %66 = vector.broadcast %42 : vector<1x8xf32> to vector<8x8xf32>
    %67 = arith.addf %65, %66 : vector<8x8xf32>
    %cst_34 = arith.constant dense<0xFF800000> : vector<8xf32>
    %68 = vector.multi_reduction <maximumf>, %67, %cst_34 [1] : vector<8x8xf32> to vector<8xf32>
    %69 = vector.shape_cast %68 : vector<8xf32> to vector<8x1xf32>
    %70 = vector.broadcast %69 : vector<8x1xf32> to vector<8x8xf32>
    %71 = arith.subf %67, %70 : vector<8x8xf32>
    %72 = math.exp %71 : vector<8x8xf32>
    %cst_35 = arith.constant dense<0.000000e+00> : vector<8xf32>
    %73 = vector.multi_reduction <add>, %72, %cst_35 [1] : vector<8x8xf32> to vector<8xf32>
    %74 = vector.shape_cast %73 : vector<8xf32> to vector<8x1xf32>
    %75 = arith.truncf %72 : vector<8x8xf32> to vector<8x8xbf16>
    %cst_36 = arith.constant dense<0.000000e+00> : vector<8x8xf32>
    %76 = tpu.matmul %75, %64, %cst_36 {dimension_numbers = #tpu.dot_dimension_numbers<[1], [0], [0], [1], [0, 0, 1, 1], [], []>} : vector<8x8xbf16>, vector<8x8xbf16>, vector<8x8xf32> -> vector<8x8xf32>
    %77 = tpu.reciprocal %74 {approx = true} : vector<8x1xf32> -> vector<8x1xf32>
    %78 = vector.broadcast %77 : vector<8x1xf32> to vector<8x8xf32>
    %79 = arith.mulf %76, %78 : vector<8x8xf32>
    %c0_37 = arith.constant 0 : index
    %c8_38 = arith.constant 8 : index
    %80 = vector.load %arg21[%c0_37, %c8_38] : memref<8x32xf32, #tpu.memory_space<vmem>>, vector<8x8xf32>
    tpu.vector_store %arg21[%c0_37, %c8_38], %79 {strides = array<i32>} : memref<8x32xf32, #tpu.memory_space<vmem>>, vector<8x8xf32>,
    %81 = vector.extract_strided_slice %35 {offsets = [0, 16], sizes = [8, 8], strides = [1, 1]} : vector<8x32xbf16> to vector<8x8xbf16>
    %c0_39 = arith.constant 0 : index
    %c16 = arith.constant 16 : index
    %82 = vector.load %arg20[%c0_39, %c16] : memref<8x64xbf16, #tpu.memory_space<vmem>>, vector<8x8xbf16>
    %c0_40 = arith.constant 0 : index
    %c48 = arith.constant 48 : index
    %83 = vector.load %arg20[%c0_40, %c48] : memref<8x64xbf16, #tpu.memory_space<vmem>>, vector<8x8xbf16>
    %cst_41 = arith.constant dense<0.000000e+00> : vector<8x8xf32>
    %84 = tpu.matmul %81, %82, %cst_41 {dimension_numbers = #tpu.dot_dimension_numbers<[1], [1], [0], [0], [0, 0, 1, 0], [], []>} : vector<8x8xbf16>, vector<8x8xbf16>, vector<8x8xf32> -> vector<8x8xf32>
    %85 = vector.broadcast %42 : vector<1x8xf32> to vector<8x8xf32>
    %86 = arith.addf %84, %85 : vector<8x8xf32>
    %cst_42 = arith.constant dense<0xFF800000> : vector<8xf32>
    %87 = vector.multi_reduction <maximumf>, %86, %cst_42 [1] : vector<8x8xf32> to vector<8xf32>
    %88 = vector.shape_cast %87 : vector<8xf32> to vector<8x1xf32>
    %89 = vector.broadcast %88 : vector<8x1xf32> to vector<8x8xf32>
    %90 = arith.subf %86, %89 : vector<8x8xf32>
    %91 = math.exp %90 : vector<8x8xf32>
    %cst_43 = arith.constant dense<0.000000e+00> : vector<8xf32>
    %92 = vector.multi_reduction <add>, %91, %cst_43 [1] : vector<8x8xf32> to vector<8xf32>
    %93 = vector.shape_cast %92 : vector<8xf32> to vector<8x1xf32>
    %94 = arith.truncf %91 : vector<8x8xf32> to vector<8x8xbf16>
    %cst_44 = arith.constant dense<0.000000e+00> : vector<8x8xf32>
    %95 = tpu.matmul %94, %83, %cst_44 {dimension_numbers = #tpu.dot_dimension_numbers<[1], [0], [0], [1], [0, 0, 1, 1], [], []>} : vector<8x8xbf16>, vector<8x8xbf16>, vector<8x8xf32> -> vector<8x8xf32>
    %96 = tpu.reciprocal %93 {approx = true} : vector<8x1xf32> -> vector<8x1xf32>
    %97 = vector.broadcast %96 : vector<8x1xf32> to vector<8x8xf32>
    %98 = arith.mulf %95, %97 : vector<8x8xf32>
    %c0_45 = arith.constant 0 : index
    %c16_46 = arith.constant 16 : index
    %99 = vector.load %arg21[%c0_45, %c16_46] : memref<8x32xf32, #tpu.memory_space<vmem>>, vector<8x8xf32>
    tpu.vector_store %arg21[%c0_45, %c16_46], %98 {strides = array<i32>} : memref<8x32xf32, #tpu.memory_space<vmem>>, vector<8x8xf32>,
    %100 = vector.extract_strided_slice %35 {offsets = [0, 24], sizes = [8, 8], strides = [1, 1]} : vector<8x32xbf16> to vector<8x8xbf16>
    %c0_47 = arith.constant 0 : index
    %c24 = arith.constant 24 : index
    %101 = vector.load %arg20[%c0_47, %c24] : memref<8x64xbf16, #tpu.memory_space<vmem>>, vector<8x8xbf16>
    %c0_48 = arith.constant 0 : index
    %c56 = arith.constant 56 : index
    %102 = vector.load %arg20[%c0_48, %c56] : memref<8x64xbf16, #tpu.memory_space<vmem>>, vector<8x8xbf16>
    %cst_49 = arith.constant dense<0.000000e+00> : vector<8x8xf32>
    %103 = tpu.matmul %100, %101, %cst_49 {dimension_numbers = #tpu.dot_dimension_numbers<[1], [1], [0], [0], [0, 0, 1, 0], [], []>} : vector<8x8xbf16>, vector<8x8xbf16>, vector<8x8xf32> -> vector<8x8xf32>
    %104 = vector.broadcast %42 : vector<1x8xf32> to vector<8x8xf32>
    %105 = arith.addf %103, %104 : vector<8x8xf32>
    %cst_50 = arith.constant dense<0xFF800000> : vector<8xf32>
    %106 = vector.multi_reduction <maximumf>, %105, %cst_50 [1] : vector<8x8xf32> to vector<8xf32>
    %107 = vector.shape_cast %106 : vector<8xf32> to vector<8x1xf32>
    %108 = vector.broadcast %107 : vector<8x1xf32> to vector<8x8xf32>
    %109 = arith.subf %105, %108 : vector<8x8xf32>
    %110 = math.exp %109 : vector<8x8xf32>
    %cst_51 = arith.constant dense<0.000000e+00> : vector<8xf32>
    %111 = vector.multi_reduction <add>, %110, %cst_51 [1] : vector<8x8xf32> to vector<8xf32>
    %112 = vector.shape_cast %111 : vector<8xf32> to vector<8x1xf32>
    %113 = arith.truncf %110 : vector<8x8xf32> to vector<8x8xbf16>
    %cst_52 = arith.constant dense<0.000000e+00> : vector<8x8xf32>
    %114 = tpu.matmul %113, %102, %cst_52 {dimension_numbers = #tpu.dot_dimension_numbers<[1], [0], [0], [1], [0, 0, 1, 1], [], []>} : vector<8x8xbf16>, vector<8x8xbf16>, vector<8x8xf32> -> vector<8x8xf32>
    %115 = tpu.reciprocal %112 {approx = true} : vector<8x1xf32> -> vector<8x1xf32>
    %116 = vector.broadcast %115 : vector<8x1xf32> to vector<8x8xf32>
    %117 = arith.mulf %114, %116 : vector<8x8xf32>
    %c0_53 = arith.constant 0 : index
    %c24_54 = arith.constant 24 : index
    %118 = vector.load %arg21[%c0_53, %c24_54] : memref<8x32xf32, #tpu.memory_space<vmem>>, vector<8x8xf32>
    tpu.vector_store %arg21[%c0_53, %c24_54], %117 {strides = array<i32>} : memref<8x32xf32, #tpu.memory_space<vmem>>, vector<8x8xf32>,
    %c0_55 = arith.constant 0 : index
    %c0_56 = arith.constant 0 : index
    %119 = vector.load %arg21[%c0_55, %c0_56] : memref<8x32xf32, #tpu.memory_space<vmem>>, vector<8x32xf32>
    %120 = arith.truncf %119 : vector<8x32xf32> to vector<8x32xbf16>
    %c0_57 = arith.constant 0 : index
    %c0_58 = arith.constant 0 : index
    %121 = vector.load %arg13[%c0_57, %c0_58] : memref<32x32xbf16, #tpu.memory_space<vmem>>, vector<32x32xbf16>
    %cst_59 = arith.constant dense<0.000000e+00> : vector<8x32xf32>
    %122 = tpu.matmul %120, %121, %cst_59 {dimension_numbers = #tpu.dot_dimension_numbers<[1], [0], [0], [1], [0, 0, 1, 1], [], []>} : vector<8x32xbf16>, vector<32x32xbf16>, vector<8x32xf32> -> vector<8x32xf32>
    %c0_60 = arith.constant 0 : index
    %c0_61 = arith.constant 0 : index
    %123 = vector.load %arg14[%c0_60, %c0_61] : memref<1x32xf32, #tpu.memory_space<vmem>>, vector<1x32xf32>
    %124 = vector.broadcast %123 : vector<1x32xf32> to vector<8x32xf32>
    %125 = arith.addf %122, %124 : vector<8x32xf32>
    %126 = arith.addf %6, %125 : vector<8x32xf32>
    %c0_62 = arith.constant 0 : index
    %c0_63 = arith.constant 0 : index
    %127 = vector.load %arg7[%c0_62, %c0_63] : memref<1x32xf32, #tpu.memory_space<vmem>>, vector<1x32xf32>
    %c0_64 = arith.constant 0 : index
    %c0_65 = arith.constant 0 : index
    %128 = vector.load %arg8[%c0_64, %c0_65] : memref<1x32xf32, #tpu.memory_space<vmem>>, vector<1x32xf32>
    %cst_66 = arith.constant dense<0.000000e+00> : vector<8xf32>
    %129 = vector.multi_reduction <add>, %126, %cst_66 [1] : vector<8x32xf32> to vector<8xf32>
    %130 = vector.shape_cast %129 : vector<8xf32> to vector<8x1xf32>
    %cst_67 = arith.constant 3.200000e+01 : f32
    %131 = vector.broadcast %cst_67 : f32 to vector<8x1xf32>
    %132 = arith.divf %130, %131 : vector<8x1xf32>
    %133 = vector.broadcast %132 : vector<8x1xf32> to vector<8x32xf32>
    %134 = arith.subf %126, %133 : vector<8x32xf32>
    %135 = arith.mulf %134, %134 : vector<8x32xf32>
    %cst_68 = arith.constant dense<0.000000e+00> : vector<8xf32>
    %136 = vector.multi_reduction <add>, %135, %cst_68 [1] : vector<8x32xf32> to vector<8xf32>
    %137 = vector.shape_cast %136 : vector<8xf32> to vector<8x1xf32>
    %cst_69 = arith.constant 3.200000e+01 : f32
    %138 = vector.broadcast %cst_69 : f32 to vector<8x1xf32>
    %139 = arith.divf %137, %138 : vector<8x1xf32>
    %140 = vector.broadcast %132 : vector<8x1xf32> to vector<8x32xf32>
    %141 = arith.subf %126, %140 : vector<8x32xf32>
    %cst_70 = arith.constant 9.99999974E-6 : f32
    %142 = vector.broadcast %cst_70 : f32 to vector<8x1xf32>
    %143 = arith.addf %139, %142 : vector<8x1xf32>
    %144 = math.rsqrt %143 : vector<8x1xf32>
    %145 = vector.broadcast %144 : vector<8x1xf32> to vector<8x32xf32>
    %146 = arith.mulf %141, %145 : vector<8x32xf32>
    %147 = vector.broadcast %127 : vector<1x32xf32> to vector<8x32xf32>
    %148 = arith.mulf %146, %147 : vector<8x32xf32>
    %149 = vector.broadcast %128 : vector<1x32xf32> to vector<8x32xf32>
    %150 = arith.addf %148, %149 : vector<8x32xf32>
    %151 = arith.truncf %150 : vector<8x32xf32> to vector<8x32xbf16>
    %c0_71 = arith.constant 0 : index
    %c0_72 = arith.constant 0 : index
    %152 = vector.load %arg15[%c0_71, %c0_72] : memref<32x64xbf16, #tpu.memory_space<vmem>>, vector<32x64xbf16>
    %cst_73 = arith.constant dense<0.000000e+00> : vector<8x64xf32>
    %153 = tpu.matmul %151, %152, %cst_73 {dimension_numbers = #tpu.dot_dimension_numbers<[1], [0], [0], [1], [0, 0, 1, 1], [], []>} : vector<8x32xbf16>, vector<32x64xbf16>, vector<8x64xf32> -> vector<8x64xf32>
    %c0_74 = arith.constant 0 : index
    %c0_75 = arith.constant 0 : index
    %154 = vector.load %arg16[%c0_74, %c0_75] : memref<1x64xf32, #tpu.memory_space<vmem>>, vector<1x64xf32>
    %155 = vector.broadcast %154 : vector<1x64xf32> to vector<8x64xf32>
    %156 = arith.addf %153, %155 : vector<8x64xf32>
    %cst_76 = arith.constant 0.000000e+00 : f32
    %157 = vector.broadcast %cst_76 : f32 to vector<8x64xf32>
    %158 = arith.maximumf %156, %157 : vector<8x64xf32>
    %159 = arith.truncf %158 : vector<8x64xf32> to vector<8x64xbf16>
    %c0_77 = arith.constant 0 : index
    %c0_78 = arith.constant 0 : index
    %160 = vector.load %arg17[%c0_77, %c0_78] : memref<64x32xbf16, #tpu.memory_space<vmem>>, vector<64x32xbf16>
    %cst_79 = arith.constant dense<0.000000e+00> : vector<8x32xf32>
    %161 = tpu.matmul %159, %160, %cst_79 {dimension_numbers = #tpu.dot_dimension_numbers<[1], [0], [0], [1], [0, 0, 1, 1], [], []>} : vector<8x64xbf16>, vector<64x32xbf16>, vector<8x32xf32> -> vector<8x32xf32>
    %c0_80 = arith.constant 0 : index
    %c0_81 = arith.constant 0 : index
    %162 = vector.load %arg18[%c0_80, %c0_81] : memref<1x32xf32, #tpu.memory_space<vmem>>, vector<1x32xf32>
    %163 = vector.broadcast %162 : vector<1x32xf32> to vector<8x32xf32>
    %164 = arith.addf %161, %163 : vector<8x32xf32>
    %165 = arith.addf %126, %164 : vector<8x32xf32>
    %c0_82 = arith.constant 0 : index
    %c0_83 = arith.constant 0 : index
    %c0_84 = arith.constant 0 : index
    %166 = vector.load %arg19[%c0_82, %c0_83, %c0_84] : memref<1x8x32xf32, #tpu.memory_space<vmem>>, vector<1x8x32xf32>
    %167 = vector.shape_cast %166 : vector<1x8x32xf32> to vector<8x32xf32>
    %168 = vector.shape_cast %165 : vector<8x32xf32> to vector<1x8x32xf32>
    tpu.vector_store %arg19[%c0_82, %c0_83, %c0_84], %168 {strides = array<i32>} : memref<1x8x32xf32, #tpu.memory_space<vmem>>, vector<1x8x32xf32>,
    return
  }
  func.func @transform_0(%arg0: i32, %arg1: i32) -> (i32, i32, i32) {
    %c0_i32 = arith.constant 0 : i32
    %c0_i32_0 = arith.constant 0 : i32
    return %arg0, %arg1, %c0_i32 : i32, i32, i32
  }
  func.func @transform_1(%arg0: i32, %arg1: i32) -> (i32, i32, i32) {
    %c0_i32 = arith.constant 0 : i32
    %c0_i32_0 = arith.constant 0 : i32
    %c0_i32_1 = arith.constant 0 : i32
    return %arg0, %c0_i32, %c0_i32_0 : i32, i32, i32
  }
  func.func @transform_2(%arg0: i32, %arg1: i32) -> (i32, i32, i32) {
    %c0_i32 = arith.constant 0 : i32
    %c0_i32_0 = arith.constant 0 : i32
    %c0_i32_1 = arith.constant 0 : i32
    return %arg0, %c0_i32, %c0_i32_0 : i32, i32, i32
  }
  func.func @transform_3(%arg0: i32, %arg1: i32) -> (i32, i32) {
    %c0_i32 = arith.constant 0 : i32
    %c0_i32_0 = arith.constant 0 : i32
    %c0_i32_1 = arith.constant 0 : i32
    return %c0_i32, %c0_i32_0 : i32, i32
  }
  func.func @transform_4(%arg0: i32, %arg1: i32) -> (i32, i32) {
    %c0_i32 = arith.constant 0 : i32
    %c0_i32_0 = arith.constant 0 : i32
    %c0_i32_1 = arith.constant 0 : i32
    return %c0_i32, %c0_i32_0 : i32, i32
  }
  func.func @transform_5(%arg0: i32, %arg1: i32) -> (i32, i32) {
    %c0_i32 = arith.constant 0 : i32
    %c0_i32_0 = arith.constant 0 : i32
    %c0_i32_1 = arith.constant 0 : i32
    return %c0_i32, %c0_i32_0 : i32, i32
  }
  func.func @transform_6(%arg0: i32, %arg1: i32) -> (i32, i32) {
    %c0_i32 = arith.constant 0 : i32
    %c0_i32_0 = arith.constant 0 : i32
    %c0_i32_1 = arith.constant 0 : i32
    return %c0_i32, %c0_i32_0 : i32, i32
  }
  func.func @transform_7(%arg0: i32, %arg1: i32) -> (i32, i32) {
    %c0_i32 = arith.constant 0 : i32
    %c0_i32_0 = arith.constant 0 : i32
    %c0_i32_1 = arith.constant 0 : i32
    return %c0_i32, %c0_i32_0 : i32, i32
  }
  func.func @transform_8(%arg0: i32, %arg1: i32) -> (i32, i32) {
    %c0_i32 = arith.constant 0 : i32
    %c0_i32_0 = arith.constant 0 : i32
    %c0_i32_1 = arith.constant 0 : i32
    return %c0_i32, %c0_i32_0 : i32, i32
  }
  func.func @transform_9(%arg0: i32, %arg1: i32) -> (i32, i32) {
    %c0_i32 = arith.constant 0 : i32
    %c0_i32_0 = arith.constant 0 : i32
    %c0_i32_1 = arith.constant 0 : i32
    return %c0_i32, %c0_i32_0 : i32, i32
  }
  func.func @transform_10(%arg0: i32, %arg1: i32) -> (i32, i32) {
    %c0_i32 = arith.constant 0 : i32
    %c0_i32_0 = arith.constant 0 : i32
    %c0_i32_1 = arith.constant 0 : i32
    return %c0_i32, %c0_i32_0 : i32, i32
  }
  func.func @transform_11(%arg0: i32, %arg1: i32) -> (i32, i32) {
    %c0_i32 = arith.constant 0 : i32
    %c0_i32_0 = arith.constant 0 : i32
    %c0_i32_1 = arith.constant 0 : i32
    return %c0_i32, %c0_i32_0 : i32, i32
  }
  func.func @transform_12(%arg0: i32, %arg1: i32) -> (i32, i32) {
    %c0_i32 = arith.constant 0 : i32
    %c0_i32_0 = arith.constant 0 : i32
    %c0_i32_1 = arith.constant 0 : i32
    return %c0_i32, %c0_i32_0 : i32, i32
  }
  func.func @transform_13(%arg0: i32, %arg1: i32) -> (i32, i32) {
    %c0_i32 = arith.constant 0 : i32
    %c0_i32_0 = arith.constant 0 : i32
    %c0_i32_1 = arith.constant 0 : i32
    return %c0_i32, %c0_i32_0 : i32, i32
  }
  func.func @transform_14(%arg0: i32, %arg1: i32) -> (i32, i32) {
    %c0_i32 = arith.constant 0 : i32
    %c0_i32_0 = arith.constant 0 : i32
    %c0_i32_1 = arith.constant 0 : i32
    return %c0_i32, %c0_i32_0 : i32, i32
  }
  func.func @transform_15(%arg0: i32, %arg1: i32) -> (i32, i32) {
    %c0_i32 = arith.constant 0 : i32
    %c0_i32_0 = arith.constant 0 : i32
    %c0_i32_1 = arith.constant 0 : i32
    return %c0_i32, %c0_i32_0 : i32, i32
  }
  func.func @transform_16(%arg0: i32, %arg1: i32) -> (i32, i32) {
    %c0_i32 = arith.constant 0 : i32
    %c0_i32_0 = arith.constant 0 : i32
    %c0_i32_1 = arith.constant 0 : i32
    return %c0_i32, %c0_i32_0 : i32, i32
  }
  func.func @transform_17(%arg0: i32, %arg1: i32) -> (i32, i32, i32) {
    %c0_i32 = arith.constant 0 : i32
    %c0_i32_0 = arith.constant 0 : i32
    return %arg0, %arg1, %c0_i32 : i32, i32, i32
  }
}

</mosaic_0001>

<llo_original>
// kernel: tpu_custom_call.1
$region0: #{tpu_custom_call.1}
  #allocation0 [shape = 'u32[]', space=smem, size = 0x4, offset = 0x4, fixed_abs, tag = 'smem constant byte address 0x4 - core index']
  #allocation1 [shape = 'u32[144,128]{1,0:T(1,128)}', space=vmem, size = 0x12000, scoped, tag = 'internal scratch']
  #allocation2 [shape = 'bf16[8,64]{1,0:T(8,128)(2,1)}', space=vmem, size = 0x800, scoped, tag = 'scratch operand']
  #allocation3 [shape = 'f32[8,32]{1,0:T(8,128)}', space=vmem, size = 0x1000, scoped, tag = 'scratch operand']
  %s0 = inlined_call_operand.vmem [shape: f32[2,8,32], index: 0, kind: input, shape index: {}]
  %s1 = inlined_call_operand.vmem [shape: f32[2,8,32], index: 1, kind: input, shape index: {}]
  %s2 = inlined_call_operand.hbm [shape: f32[2,1,8], index: 2, kind: input, shape index: {}]
  %s3 = inlined_call_operand.vmem [shape: f32[1,32], index: 3, kind: input, shape index: {}]
  %s4 = inlined_call_operand.hbm [shape: f32[1,32], index: 4, kind: input, shape index: {}]
  %s5 = inlined_call_operand.hbm [shape: f32[1,32], index: 5, kind: input, shape index: {}]
  %s6 = inlined_call_operand.hbm [shape: f32[1,32], index: 6, kind: input, shape index: {}]
  %s7 = inlined_call_operand.vmem [shape: bf16[32,32], index: 7, kind: input, shape index: {}]
  %s8 = inlined_call_operand.hbm [shape: f32[1,32], index: 8, kind: input, shape index: {}]
  %s9 = inlined_call_operand.vmem [shape: bf16[32,64], index: 9, kind: input, shape index: {}]
  %s10 = inlined_call_operand.hbm [shape: f32[1,64], index: 10, kind: input, shape index: {}]
  %s11 = inlined_call_operand.hbm [shape: bf16[32,32], index: 11, kind: input, shape index: {}]
  %s12 = inlined_call_operand.hbm [shape: f32[1,32], index: 12, kind: input, shape index: {}]
  %s13 = inlined_call_operand.vmem [shape: bf16[32,64], index: 13, kind: input, shape index: {}]
  %s14 = inlined_call_operand.vmem [shape: f32[1,64], index: 14, kind: input, shape index: {}]
  %s15 = inlined_call_operand.vmem [shape: bf16[64,32], index: 15, kind: input, shape index: {}]
  %s16 = inlined_call_operand.vmem [shape: f32[1,32], index: 16, kind: input, shape index: {}]
  %s17 = inlined_call_operand.hbm [shape: f32[2,8,32], index: 17, kind: output, shape index: {}]
  %s18 = sld [smem:[#allocation0]]
  $region137: #{tpu_custom_call.1} parent=0
    _
  %s20 = ssub.s32 1, %s18
  %s21 = scalar_select 0, %s20, %s18
  $region1: #{tpu_custom_call.1} parent=0
    #allocation4 [shape = 'u8[1024]{0}', space=vmem, size = 0x400, scoped, tag = 'input window, operand 2']
    #allocation5 [shape = 's32[2]{0}', space=sflag, size = 0x8, scoped, tag = 'scoped memory for tpu_custom_call.1']
    #allocation6 [shape = 's32[2]{0}', space=sflag, size = 0x8, scoped, tag = 'scoped memory for tpu_custom_call.1']
    #allocation7 [shape = 'u8[512]{0}', space=vmem, size = 0x400, scoped, tag = 'input window, operand 4, single buffered']
    #allocation8 [shape = 's32[1]{0}', space=sflag, size = 0x4, scoped, tag = 'scoped memory for tpu_custom_call.1']
    #allocation9 [shape = 'u8[512]{0}', space=vmem, size = 0x400, scoped, tag = 'input window, operand 5, single buffered']
    #allocation10 [shape = 'u8[512]{0}', space=vmem, size = 0x400, scoped, tag = 'input window, operand 6, single buffered']
    #allocation11 [shape = 's32[1]{0}', space=sflag, size = 0x4, scoped, tag = 'scoped memory for tpu_custom_call.1']
    #allocation12 [shape = 'u8[512]{0}', space=vmem, size = 0x400, scoped, tag = 'input window, operand 8, single buffered']
    #allocation13 [shape = 'u8[512]{0}', space=vmem, size = 0x400, scoped, tag = 'input window, operand 10, single buffered']
    #allocation14 [shape = 's32[1]{0}', space=sflag, size = 0x4, scoped, tag = 'scoped memory for tpu_custom_call.1']
    #allocation15 [shape = 'u8[8192]{0}', space=vmem, size = 0x2000, scoped, tag = 'input window, operand 11, single buffered']
    #allocation16 [shape = 'u8[512]{0}', space=vmem, size = 0x400, scoped, tag = 'input window, operand 12, single buffered']
    #allocation17 [shape = 's32[1]{0}', space=sflag, size = 0x4, scoped, tag = 'scoped memory for tpu_custom_call.1']
    #allocation18 [shape = 'u8[8192]{0}', space=vmem, size = 0x2000, scoped, tag = 'output window, operand 0']
    %22 = vsyncpa [#allocation5], 0
    %s23 = scalar_lea.sflag [#allocation5], 1
    %24 = vsyncpa %s23, 0
    %25 = vsyncpa [#allocation8], 0
    %26 = vsyncpa [#allocation11], 0
    %27 = vsyncpa [#allocation14], 0
    %28 = vsyncpa [#allocation17], 0
    %29 = vsyncpa [#allocation6], 0
    %s30 = scalar_lea.sflag [#allocation6], 1
    %31 = vsyncpa %s30, 0
    loop: start=0, step=1, limit=4
    $region2: #{tpu_custom_call.1} parent=1 // loop_pre_header
      _
    $region3: #{tpu_custom_call.1} parent=1 // loop_header
      %s33 = sphi 0, %s37
      %p34 = scmp.ge.s32.totalorder %s33, 4
      %s40 = sphi 0, %s52
      %s41 = sphi 0, %s48
      %s42 = sphi 0, %s40
      %s43 = sphi 0, %s41
      %s44 = sphi 0, %s42
      %s45 = sphi 0, %s43
      %s57 = sphi 0, %s59
      %s60 = sphi 0, %s57
      %s61 = sphi 0, %s60
      %s77 = sphi 0, %s61
      %s83 = sphi 0, %s85
      %s86 = sphi 0, %s83
      %s87 = sphi 0, %s86
      %s103 = sphi 0, %s87
      %s109 = sphi 0, %s111
      %s112 = sphi 0, %s109
      %s113 = sphi 0, %s112
      %s129 = sphi 0, %s113
      %s133 = sphi 0, %s133
      %s135 = sphi 0, %s133
      %s136 = sphi 0, %s135
      %s150 = sphi 0, %s136
      %s154 = sphi 0, %s154
      %s156 = sphi 0, %s154
      %s157 = sphi 0, %s156
      %s171 = sphi 0, %s157
      %s175 = sphi 0, %s175
      %s177 = sphi 0, %s175
      %s178 = sphi 0, %s177
      %s192 = sphi 0, %s178
      %s196 = sphi 0, %s196
      %s198 = sphi 0, %s196
      %s199 = sphi 0, %s198
      %s213 = sphi 0, %s199
      %s217 = sphi 0, %s217
      %s219 = sphi 0, %s217
      %s220 = sphi 0, %s219
      %s234 = sphi 0, %s220
      %s238 = sphi 0, %s238
      %s240 = sphi 0, %s238
      %s241 = sphi 0, %s240
      %s255 = sphi 0, %s241
      %s259 = sphi 0, %s259
      %s261 = sphi 0, %s259
      %s262 = sphi 0, %s261
      %s276 = sphi 0, %s262
      %s280 = sphi 0, %s280
      %s282 = sphi 0, %s280
      %s283 = sphi 0, %s282
      %s297 = sphi 0, %s283
      %s301 = sphi 0, %s301
      %s303 = sphi 0, %s301
      %s304 = sphi 0, %s303
      %s318 = sphi 0, %s304
      %s322 = sphi 0, %s322
      %s324 = sphi 0, %s322
      %s325 = sphi 0, %s324
      %s339 = sphi 0, %s325
      %s343 = sphi 0, %s343
      %s345 = sphi 0, %s343
      %s346 = sphi 0, %s345
      %s360 = sphi 0, %s346
      %s364 = sphi 0, %s364
      %s366 = sphi 0, %s364
      %s367 = sphi 0, %s366
      %s381 = sphi 0, %s367
      %s385 = sphi 0, %s385
      %s387 = sphi 0, %s385
      %s388 = sphi 0, %s387
      %s402 = sphi 0, %s388
      %s406 = sphi 0, %s406
      %s408 = sphi 0, %s406
      %s409 = sphi 0, %s408
      %s423 = sphi 0, %s409
      %s431 = sphi 0, %s433
      %s434 = sphi 0, %s431
      %s435 = sphi 0, %s434
      %s451 = sphi 0, %s435
    $region4: #{tpu_custom_call.1} parent=1 // loop_header_branch
      %36 = sbr.rel (%p34) target = $region8
    $region5: #{tpu_custom_call.1} parent=1 // loop_body
      %s38 = ssub.s32 %s33, 1
      %s39 = ssub.s32 %s33, 2
      %s46 = sadd.s32 1, %s41
      %p47 = scmp.ge.s32.totalorder %s46, 1
      %s48 = scalar_select %p47, 0, %s46
      %s49 = sadd.s32 1, %s40
      %s50 = scalar_select %p47, %s49, %s40
      %p51 = scmp.ge.s32.totalorder %s50, 2
      %s52 = scalar_select %p51, 0, %s50
      %s53 = ssub.s32 %s40, %s52
      %s54 = ssub.s32 %s41, %s48
      %s55 = sor.u32 %s53, %s54
      %p56 = scmp.eq.s32.totalorder %s55, 0
      %s58 = sadd.s32 %s57, 1
      %s59 = scalar_select %p56, %s57, %s58
      %p62 = pneg %p56
      %p63 = scmp.eq.s32.totalorder %s33, 1
      %p64 = por %p62, %p63
      %p65 = scmp.ne.s32.totalorder %s57, %s60
      %p66 = scmp.eq.s32.totalorder %s33, 0
      %p67 = por %p65, %p66
      %p68 = scmp.ne.s32.totalorder %s57, %s60
      %p69 = scmp.eq.s32.totalorder %s38, 1
      %p70 = por %p68, %p69
      %p71 = scmp.ne.s32.totalorder %s60, %s61
      %p72 = scmp.eq.s32.totalorder %s38, 0
      %p73 = por %p71, %p72
      %p74 = scmp.ne.s32.totalorder %s60, %s61
      %p75 = scmp.eq.s32.totalorder %s39, 1
      %p76 = por %p74, %p75
      %p78 = scmp.ne.s32.totalorder %s61, %s77
      %p79 = scmp.eq.s32.totalorder %s39, 0
      %p80 = por %p78, %p79
      %s81 = ssub.s32 %s40, %s52
      %p82 = scmp.eq.s32.totalorder %s81, 0
      %s84 = sadd.s32 %s83, 1
      %s85 = scalar_select %p82, %s83, %s84
      %p88 = pneg %p82
      %p89 = scmp.eq.s32.totalorder %s33, 1
      %p90 = por %p88, %p89
      %p91 = scmp.ne.s32.totalorder %s83, %s86
      %p92 = scmp.eq.s32.totalorder %s33, 0
      %p93 = por %p91, %p92
      %p94 = scmp.ne.s32.totalorder %s83, %s86
      %p95 = scmp.eq.s32.totalorder %s38, 1
      %p96 = por %p94, %p95
      %p97 = scmp.ne.s32.totalorder %s86, %s87
      %p98 = scmp.eq.s32.totalorder %s38, 0
      %p99 = por %p97, %p98
      %p100 = scmp.ne.s32.totalorder %s86, %s87
      %p101 = scmp.eq.s32.totalorder %s39, 1
      %p102 = por %p100, %p101
      %p104 = scmp.ne.s32.totalorder %s87, %s103
      %p105 = scmp.eq.s32.totalorder %s39, 0
      %p106 = por %p104, %p105
      %s107 = ssub.s32 %s40, %s52
      %p108 = scmp.eq.s32.totalorder %s107, 0
      %s110 = sadd.s32 %s109, 1
      %s111 = scalar_select %p108, %s109, %s110
      %p114 = pneg %p108
      %p115 = scmp.eq.s32.totalorder %s33, 1
      %p116 = por %p114, %p115
      %p117 = scmp.ne.s32.totalorder %s109, %s112
      %p118 = scmp.eq.s32.totalorder %s33, 0
      %p119 = por %p117, %p118
      %p120 = scmp.ne.s32.totalorder %s109, %s112
      %p121 = scmp.eq.s32.totalorder %s38, 1
      %p122 = por %p120, %p121
      %p123 = scmp.ne.s32.totalorder %s112, %s113
      %p124 = scmp.eq.s32.totalorder %s38, 0
      %p125 = por %p123, %p124
      %p126 = scmp.ne.s32.totalorder %s112, %s113
      %p127 = scmp.eq.s32.totalorder %s39, 1
      %p128 = por %p126, %p127
      %p130 = scmp.ne.s32.totalorder %s113, %s129
      %p131 = scmp.eq.s32.totalorder %s39, 0
      %p132 = por %p130, %p131
      %s134 = sadd.s32 %s133, 1
      %p137 = scmp.eq.s32.totalorder %s33, 1
      %p138 = scmp.ne.s32.totalorder %s133, %s135
      %p139 = scmp.eq.s32.totalorder %s33, 0
      %p140 = por %p138, %p139
      %p141 = scmp.ne.s32.totalorder %s133, %s135
      %p142 = scmp.eq.s32.totalorder %s38, 1
      %p143 = por %p141, %p142
      %p144 = scmp.ne.s32.totalorder %s135, %s136
      %p145 = scmp.eq.s32.totalorder %s38, 0
      %p146 = por %p144, %p145
      %p147 = scmp.ne.s32.totalorder %s135, %s136
      %p148 = scmp.eq.s32.totalorder %s39, 1
      %p149 = por %p147, %p148
      %p151 = scmp.ne.s32.totalorder %s136, %s150
      %p152 = scmp.eq.s32.totalorder %s39, 0
      %p153 = por %p151, %p152
      %s155 = sadd.s32 %s154, 1
      %p158 = scmp.eq.s32.totalorder %s33, 1
      %p159 = scmp.ne.s32.totalorder %s154, %s156
      %p160 = scmp.eq.s32.totalorder %s33, 0
      %p161 = por %p159, %p160
      %p162 = scmp.ne.s32.totalorder %s154, %s156
      %p163 = scmp.eq.s32.totalorder %s38, 1
      %p164 = por %p162, %p163
      %p165 = scmp.ne.s32.totalorder %s156, %s157
      %p166 = scmp.eq.s32.totalorder %s38, 0
      %p167 = por %p165, %p166
      %p168 = scmp.ne.s32.totalorder %s156, %s157
      %p169 = scmp.eq.s32.totalorder %s39, 1
      %p170 = por %p168, %p169
      %p172 = scmp.ne.s32.totalorder %s157, %s171
      %p173 = scmp.eq.s32.totalorder %s39, 0
      %p174 = por %p172, %p173
      %s176 = sadd.s32 %s175, 1
      %p179 = scmp.eq.s32.totalorder %s33, 1
      %p180 = scmp.ne.s32.totalorder %s175, %s177
      %p181 = scmp.eq.s32.totalorder %s33, 0
      %p182 = por %p180, %p181
      %p183 = scmp.ne.s32.totalorder %s175, %s177
      %p184 = scmp.eq.s32.totalorder %s38, 1
      %p185 = por %p183, %p184
      %p186 = scmp.ne.s32.totalorder %s177, %s178
      %p187 = scmp.eq.s32.totalorder %s38, 0
      %p188 = por %p186, %p187
      %p189 = scmp.ne.s32.totalorder %s177, %s178
      %p190 = scmp.eq.s32.totalorder %s39, 1
      %p191 = por %p189, %p190
      %p193 = scmp.ne.s32.totalorder %s178, %s192
      %p194 = scmp.eq.s32.totalorder %s39, 0
      %p195 = por %p193, %p194
      %s197 = sadd.s32 %s196, 1
      %p200 = scmp.eq.s32.totalorder %s33, 1
      %p201 = scmp.ne.s32.totalorder %s196, %s198
      %p202 = scmp.eq.s32.totalorder %s33, 0
      %p203 = por %p201, %p202
      %p204 = scmp.ne.s32.totalorder %s196, %s198
      %p205 = scmp.eq.s32.totalorder %s38, 1
      %p206 = por %p204, %p205
      %p207 = scmp.ne.s32.totalorder %s198, %s199
      %p208 = scmp.eq.s32.totalorder %s38, 0
      %p209 = por %p207, %p208
      %p210 = scmp.ne.s32.totalorder %s198, %s199
      %p211 = scmp.eq.s32.totalorder %s39, 1
      %p212 = por %p210, %p211
      %p214 = scmp.ne.s32.totalorder %s199, %s213
      %p215 = scmp.eq.s32.totalorder %s39, 0
      %p216 = por %p214, %p215
      %s218 = sadd.s32 %s217, 1
      %p221 = scmp.eq.s32.totalorder %s33, 1
      %p222 = scmp.ne.s32.totalorder %s217, %s219
      %p223 = scmp.eq.s32.totalorder %s33, 0
      %p224 = por %p222, %p223
      %p225 = scmp.ne.s32.totalorder %s217, %s219
      %p226 = scmp.eq.s32.totalorder %s38, 1
      %p227 = por %p225, %p226
      %p228 = scmp.ne.s32.totalorder %s219, %s220
      %p229 = scmp.eq.s32.totalorder %s38, 0
      %p230 = por %p228, %p229
      %p231 = scmp.ne.s32.totalorder %s219, %s220
      %p232 = scmp.eq.s32.totalorder %s39, 1
      %p233 = por %p231, %p232
      %p235 = scmp.ne.s32.totalorder %s220, %s234
      %p236 = scmp.eq.s32.totalorder %s39, 0
      %p237 = por %p235, %p236
      %s239 = sadd.s32 %s238, 1
      %p242 = scmp.eq.s32.totalorder %s33, 1
      %p243 = scmp.ne.s32.totalorder %s238, %s240
      %p244 = scmp.eq.s32.totalorder %s33, 0
      %p245 = por %p243, %p244
      %p246 = scmp.ne.s32.totalorder %s238, %s240
      %p247 = scmp.eq.s32.totalorder %s38, 1
      %p248 = por %p246, %p247
      %p249 = scmp.ne.s32.totalorder %s240, %s241
      %p250 = scmp.eq.s32.totalorder %s38, 0
      %p251 = por %p249, %p250
      %p252 = scmp.ne.s32.totalorder %s240, %s241
      %p253 = scmp.eq.s32.totalorder %s39, 1
      %p254 = por %p252, %p253
      %p256 = scmp.ne.s32.totalorder %s241, %s255
      %p257 = scmp.eq.s32.totalorder %s39, 0
      %p258 = por %p256, %p257
      %s260 = sadd.s32 %s259, 1
      %p263 = scmp.eq.s32.totalorder %s33, 1
      %p264 = scmp.ne.s32.totalorder %s259, %s261
      %p265 = scmp.eq.s32.totalorder %s33, 0
      %p266 = por %p264, %p265
      %p267 = scmp.ne.s32.totalorder %s259, %s261
      %p268 = scmp.eq.s32.totalorder %s38, 1
      %p269 = por %p267, %p268
      %p270 = scmp.ne.s32.totalorder %s261, %s262
      %p271 = scmp.eq.s32.totalorder %s38, 0
      %p272 = por %p270, %p271
      %p273 = scmp.ne.s32.totalorder %s261, %s262
      %p274 = scmp.eq.s32.totalorder %s39, 1
      %p275 = por %p273, %p274
      %p277 = scmp.ne.s32.totalorder %s262, %s276
      %p278 = scmp.eq.s32.totalorder %s39, 0
      %p279 = por %p277, %p278
      %s281 = sadd.s32 %s280, 1
      %p284 = scmp.eq.s32.totalorder %s33, 1
      %p285 = scmp.ne.s32.totalorder %s280, %s282
      %p286 = scmp.eq.s32.totalorder %s33, 0
      %p287 = por %p285, %p286
      %p288 = scmp.ne.s32.totalorder %s280, %s282
      %p289 = scmp.eq.s32.totalorder %s38, 1
      %p290 = por %p288, %p289
      %p291 = scmp.ne.s32.totalorder %s282, %s283
      %p292 = scmp.eq.s32.totalorder %s38, 0
      %p293 = por %p291, %p292
      %p294 = scmp.ne.s32.totalorder %s282, %s283
      %p295 = scmp.eq.s32.totalorder %s39, 1
      %p296 = por %p294, %p295
      %p298 = scmp.ne.s32.totalorder %s283, %s297
      %p299 = scmp.eq.s32.totalorder %s39, 0
      %p300 = por %p298, %p299
      %s302 = sadd.s32 %s301, 1
      %p305 = scmp.eq.s32.totalorder %s33, 1
      %p306 = scmp.ne.s32.totalorder %s301, %s303
      %p307 = scmp.eq.s32.totalorder %s33, 0
      %p308 = por %p306, %p307
      %p309 = scmp.ne.s32.totalorder %s301, %s303
      %p310 = scmp.eq.s32.totalorder %s38, 1
      %p311 = por %p309, %p310
      %p312 = scmp.ne.s32.totalorder %s303, %s304
      %p313 = scmp.eq.s32.totalorder %s38, 0
      %p314 = por %p312, %p313
      %p315 = scmp.ne.s32.totalorder %s303, %s304
      %p316 = scmp.eq.s32.totalorder %s39, 1
      %p317 = por %p315, %p316
      %p319 = scmp.ne.s32.totalorder %s304, %s318
      %p320 = scmp.eq.s32.totalorder %s39, 0
      %p321 = por %p319, %p320
      %s323 = sadd.s32 %s322, 1
      %p326 = scmp.eq.s32.totalorder %s33, 1
      %p327 = scmp.ne.s32.totalorder %s322, %s324
      %p328 = scmp.eq.s32.totalorder %s33, 0
      %p329 = por %p327, %p328
      %p330 = scmp.ne.s32.totalorder %s322, %s324
      %p331 = scmp.eq.s32.totalorder %s38, 1
      %p332 = por %p330, %p331
      %p333 = scmp.ne.s32.totalorder %s324, %s325
      %p334 = scmp.eq.s32.totalorder %s38, 0
      %p335 = por %p333, %p334
      %p336 = scmp.ne.s32.totalorder %s324, %s325
      %p337 = scmp.eq.s32.totalorder %s39, 1
      %p338 = por %p336, %p337
      %p340 = scmp.ne.s32.totalorder %s325, %s339
      %p341 = scmp.eq.s32.totalorder %s39, 0
      %p342 = por %p340, %p341
      %s344 = sadd.s32 %s343, 1
      %p347 = scmp.eq.s32.totalorder %s33, 1
      %p348 = scmp.ne.s32.totalorder %s343, %s345
      %p349 = scmp.eq.s32.totalorder %s33, 0
      %p350 = por %p348, %p349
      %p351 = scmp.ne.s32.totalorder %s343, %s345
      %p352 = scmp.eq.s32.totalorder %s38, 1
      %p353 = por %p351, %p352
      %p354 = scmp.ne.s32.totalorder %s345, %s346
      %p355 = scmp.eq.s32.totalorder %s38, 0
      %p356 = por %p354, %p355
      %p357 = scmp.ne.s32.totalorder %s345, %s346
      %p358 = scmp.eq.s32.totalorder %s39, 1
      %p359 = por %p357, %p358
      %p361 = scmp.ne.s32.totalorder %s346, %s360
      %p362 = scmp.eq.s32.totalorder %s39, 0
      %p363 = por %p361, %p362
      %s365 = sadd.s32 %s364, 1
      %p368 = scmp.eq.s32.totalorder %s33, 1
      %p369 = scmp.ne.s32.totalorder %s364, %s366
      %p370 = scmp.eq.s32.totalorder %s33, 0
      %p371 = por %p369, %p370
      %p372 = scmp.ne.s32.totalorder %s364, %s366
      %p373 = scmp.eq.s32.totalorder %s38, 1
      %p374 = por %p372, %p373
      %p375 = scmp.ne.s32.totalorder %s366, %s367
      %p376 = scmp.eq.s32.totalorder %s38, 0
      %p377 = por %p375, %p376
      %p378 = scmp.ne.s32.totalorder %s366, %s367
      %p379 = scmp.eq.s32.totalorder %s39, 1
      %p380 = por %p378, %p379
      %p382 = scmp.ne.s32.totalorder %s367, %s381
      %p383 = scmp.eq.s32.totalorder %s39, 0
      %p384 = por %p382, %p383
      %s386 = sadd.s32 %s385, 1
      %p389 = scmp.eq.s32.totalorder %s33, 1
      %p390 = scmp.ne.s32.totalorder %s385, %s387
      %p391 = scmp.eq.s32.totalorder %s33, 0
      %p392 = por %p390, %p391
      %p393 = scmp.ne.s32.totalorder %s385, %s387
      %p394 = scmp.eq.s32.totalorder %s38, 1
      %p395 = por %p393, %p394
      %p396 = scmp.ne.s32.totalorder %s387, %s388
      %p397 = scmp.eq.s32.totalorder %s38, 0
      %p398 = por %p396, %p397
      %p399 = scmp.ne.s32.totalorder %s387, %s388
      %p400 = scmp.eq.s32.totalorder %s39, 1
      %p401 = por %p399, %p400
      %p403 = scmp.ne.s32.totalorder %s388, %s402
      %p404 = scmp.eq.s32.totalorder %s39, 0
      %p405 = por %p403, %p404
      %s407 = sadd.s32 %s406, 1
      %p410 = scmp.eq.s32.totalorder %s33, 1
      %p411 = scmp.ne.s32.totalorder %s406, %s408
      %p412 = scmp.eq.s32.totalorder %s33, 0
      %p413 = por %p411, %p412
      %p414 = scmp.ne.s32.totalorder %s406, %s408
      %p415 = scmp.eq.s32.totalorder %s38, 1
      %p416 = por %p414, %p415
      %p417 = scmp.ne.s32.totalorder %s408, %s409
      %p418 = scmp.eq.s32.totalorder %s38, 0
      %p419 = por %p417, %p418
      %p420 = scmp.ne.s32.totalorder %s408, %s409
      %p421 = scmp.eq.s32.totalorder %s39, 1
      %p422 = por %p420, %p421
      %p424 = scmp.ne.s32.totalorder %s409, %s423
      %p425 = scmp.eq.s32.totalorder %s39, 0
      %p426 = por %p424, %p425
      %s427 = ssub.s32 %s40, %s52
      %s428 = ssub.s32 %s41, %s48
      %s429 = sor.u32 %s427, %s428
      %p430 = scmp.eq.s32.totalorder %s429, 0
      %s432 = sadd.s32 %s431, 1
      %s433 = scalar_select %p430, %s431, %s432
      %p436 = pneg %p430
      %p437 = scmp.eq.s32.totalorder %s33, 1
      %p438 = por %p436, %p437
      %p439 = scmp.ne.s32.totalorder %s431, %s434
      %p440 = scmp.eq.s32.totalorder %s33, 0
      %p441 = por %p439, %p440
      %p442 = scmp.ne.s32.totalorder %s431, %s434
      %p443 = scmp.eq.s32.totalorder %s38, 1
      %p444 = por %p442, %p443
      %p445 = scmp.ne.s32.totalorder %s434, %s435
      %p446 = scmp.eq.s32.totalorder %s38, 0
      %p447 = por %p445, %p446
      %p448 = scmp.ne.s32.totalorder %s434, %s435
      %p449 = scmp.eq.s32.totalorder %s39, 1
      %p450 = por %p448, %p449
      %p452 = scmp.ne.s32.totalorder %s435, %s451
      %p453 = scmp.eq.s32.totalorder %s39, 0
      %p454 = por %p452, %p453
      %p455 = scmp.le.s32.totalorder 1, %s33
      %p456 = scmp.lt.s32.totalorder %s33, 3
      %p457 = pnand %p455, %p456
      %p458 = pneg %p457
      // Predicated region
      $region9: #{tpu_custom_call.1} parent=5 // pred_check
        _
      $region10: #{tpu_custom_call.1} parent=5 // pred_check_branch
        %460 = sbr.rel (%p457) target = $region12
      $region11: #{tpu_custom_call.1} parent=5 // pred_region
        %s461 = ssub.s32 %s33, 1
        // Predicated region
        $region13: #{tpu_custom_call.1} parent=11 // pred_check
          %p462 = pneg %p146
        $region14: #{tpu_custom_call.1} parent=11 // pred_check_branch
          %464 = sbr.rel (%p462) target = $region16
        $region15: #{tpu_custom_call.1} parent=11 // pred_region
          _
        $region16: #{tpu_custom_call.1} parent=11 // pred_fallthru
          _
        // Predicated region
        $region17: #{tpu_custom_call.1} parent=11 // pred_check
          %p465 = pneg %p167
        $region18: #{tpu_custom_call.1} parent=11 // pred_check_branch
          %467 = sbr.rel (%p465) target = $region20
        $region19: #{tpu_custom_call.1} parent=11 // pred_region
          %s469 = ssub.s32 16, 16
          %470 = vsyncadd [#allocation8], %s469
          %s472 = sshll.u32 [#allocation7], 4
          %s473 = int_to_ptr.vmem [resolvable:$true] %s472
          %475 = dma.hbm_to_vmem [thread:$0]  %s4, 16, %s473, [#allocation8]
        $region20: #{tpu_custom_call.1} parent=11 // pred_fallthru
          _
        // Predicated region
        $region21: #{tpu_custom_call.1} parent=11 // pred_check
          %p476 = pneg %p188
        $region22: #{tpu_custom_call.1} parent=11 // pred_check_branch
          %478 = sbr.rel (%p476) target = $region24
        $region23: #{tpu_custom_call.1} parent=11 // pred_region
          %s480 = ssub.s32 16, 16
          %481 = vsyncadd [#allocation8], %s480
          %s483 = sshll.u32 [#allocation9], 4
          %s484 = int_to_ptr.vmem [resolvable:$true] %s483
          %486 = dma.hbm_to_vmem [thread:$0]  %s5, 16, %s484, [#allocation8]
        $region24: #{tpu_custom_call.1} parent=11 // pred_fallthru
          _
        // Predicated region
        $region25: #{tpu_custom_call.1} parent=11 // pred_check
          %p487 = pneg %p209
        $region26: #{tpu_custom_call.1} parent=11 // pred_check_branch
          %489 = sbr.rel (%p487) target = $region28
        $region27: #{tpu_custom_call.1} parent=11 // pred_region
          %s491 = ssub.s32 16, 16
          %492 = vsyncadd [#allocation11], %s491
          %s494 = sshll.u32 [#allocation10], 4
          %s495 = int_to_ptr.vmem [resolvable:$true] %s494
          %497 = dma.hbm_to_vmem [thread:$0]  %s6, 16, %s495, [#allocation11]
        $region28: #{tpu_custom_call.1} parent=11 // pred_fallthru
          _
        // Predicated region
        $region29: #{tpu_custom_call.1} parent=11 // pred_check
          %p498 = pneg %p230
        $region30: #{tpu_custom_call.1} parent=11 // pred_check_branch
          %500 = sbr.rel (%p498) target = $region32
        $region31: #{tpu_custom_call.1} parent=11 // pred_region
          _
        $region32: #{tpu_custom_call.1} parent=11 // pred_fallthru
          _
        // Predicated region
        $region33: #{tpu_custom_call.1} parent=11 // pred_check
          %p501 = pneg %p251
        $region34: #{tpu_custom_call.1} parent=11 // pred_check_branch
          %503 = sbr.rel (%p501) target = $region36
        $region35: #{tpu_custom_call.1} parent=11 // pred_region
          %s505 = ssub.s32 16, 16
          %506 = vsyncadd [#allocation11], %s505
          %s508 = sshll.u32 [#allocation12], 4
          %s509 = int_to_ptr.vmem [resolvable:$true] %s508
          %511 = dma.hbm_to_vmem [thread:$0]  %s8, 16, %s509, [#allocation11]
        $region36: #{tpu_custom_call.1} parent=11 // pred_fallthru
          _
        // Predicated region
        $region37: #{tpu_custom_call.1} parent=11 // pred_check
          %p512 = pneg %p272
        $region38: #{tpu_custom_call.1} parent=11 // pred_check_branch
          %514 = sbr.rel (%p512) target = $region40
        $region39: #{tpu_custom_call.1} parent=11 // pred_region
          _
        $region40: #{tpu_custom_call.1} parent=11 // pred_fallthru
          _
        // Predicated region
        $region41: #{tpu_custom_call.1} parent=11 // pred_check
          %p515 = pneg %p293
        $region42: #{tpu_custom_call.1} parent=11 // pred_check_branch
          %517 = sbr.rel (%p515) target = $region44
        $region43: #{tpu_custom_call.1} parent=11 // pred_region
          %s519 = ssub.s32 16, 16
          %520 = vsyncadd [#allocation14], %s519
          %s522 = sshll.u32 [#allocation13], 4
          %s523 = int_to_ptr.vmem [resolvable:$true] %s522
          %525 = dma.hbm_to_vmem [thread:$0]  %s10, 16, %s523, [#allocation14]
        $region44: #{tpu_custom_call.1} parent=11 // pred_fallthru
          _
        // Predicated region
        $region45: #{tpu_custom_call.1} parent=11 // pred_check
          %p526 = pneg %p314
        $region46: #{tpu_custom_call.1} parent=11 // pred_check_branch
          %528 = sbr.rel (%p526) target = $region48
        $region47: #{tpu_custom_call.1} parent=11 // pred_region
          %s530 = ssub.s32 256, 256
          %531 = vsyncadd [#allocation14], %s530
          %s532 = sshll.u32 [#allocation15], 4
          %s533 = int_to_ptr.vmem [resolvable:$true] %s532
          %538 = dma.hbm_to_vmem [thread:$0]  %s11, 256, %s533, [#allocation14], 64, 64, 4
        $region48: #{tpu_custom_call.1} parent=11 // pred_fallthru
          _
        // Predicated region
        $region49: #{tpu_custom_call.1} parent=11 // pred_check
          %p539 = pneg %p335
        $region50: #{tpu_custom_call.1} parent=11 // pred_check_branch
          %541 = sbr.rel (%p539) target = $region52
        $region51: #{tpu_custom_call.1} parent=11 // pred_region
          %s543 = ssub.s32 16, 16
          %544 = vsyncadd [#allocation17], %s543
          %s546 = sshll.u32 [#allocation16], 4
          %s547 = int_to_ptr.vmem [resolvable:$true] %s546
          %549 = dma.hbm_to_vmem [thread:$0]  %s12, 16, %s547, [#allocation17]
        $region52: #{tpu_custom_call.1} parent=11 // pred_fallthru
          _
        // Predicated region
        $region53: #{tpu_custom_call.1} parent=11 // pred_check
          %p550 = pneg %p356
        $region54: #{tpu_custom_call.1} parent=11 // pred_check_branch
          %552 = sbr.rel (%p550) target = $region56
        $region55: #{tpu_custom_call.1} parent=11 // pred_region
          _
        $region56: #{tpu_custom_call.1} parent=11 // pred_fallthru
          _
        // Predicated region
        $region57: #{tpu_custom_call.1} parent=11 // pred_check
          %p553 = pneg %p377
        $region58: #{tpu_custom_call.1} parent=11 // pred_check_branch
          %555 = sbr.rel (%p553) target = $region60
        $region59: #{tpu_custom_call.1} parent=11 // pred_region
          _
        $region60: #{tpu_custom_call.1} parent=11 // pred_fallthru
          _
        // Predicated region
        $region61: #{tpu_custom_call.1} parent=11 // pred_check
          %p556 = pneg %p398
        $region62: #{tpu_custom_call.1} parent=11 // pred_check_branch
          %558 = sbr.rel (%p556) target = $region64
        $region63: #{tpu_custom_call.1} parent=11 // pred_region
          _
        $region64: #{tpu_custom_call.1} parent=11 // pred_fallthru
          _
        // Predicated region
        $region65: #{tpu_custom_call.1} parent=11 // pred_check
          %p559 = pneg %p419
        $region66: #{tpu_custom_call.1} parent=11 // pred_check_branch
          %561 = sbr.rel (%p559) target = $region68
        $region67: #{tpu_custom_call.1} parent=11 // pred_region
          _
        $region68: #{tpu_custom_call.1} parent=11 // pred_fallthru
          _
      $region12: #{tpu_custom_call.1} parent=5 // pred_fallthru
        _
      %p562 = scmp.lt.s32.totalorder %s33, 2
      // Predicated region
      $region69: #{tpu_custom_call.1} parent=5 // pred_check
        %p563 = pneg %p562
      $region70: #{tpu_custom_call.1} parent=5 // pred_check_branch
        %565 = sbr.rel (%p563) target = $region72
      $region71: #{tpu_custom_call.1} parent=5 // pred_region
        // Predicated region
        $region73: #{tpu_custom_call.1} parent=71 // pred_check
          %p566 = pneg %p67
        $region74: #{tpu_custom_call.1} parent=71 // pred_check_branch
          %568 = sbr.rel (%p566) target = $region76
        $region75: #{tpu_custom_call.1} parent=71 // pred_region
          %p569 = scmp.lt.s32.totalorder %s40, 1
          %s570 = scalar_select %p569, %s40, 1
          %p571 = scmp.lt.s32.totalorder %s41, 0
          %s572 = scalar_select %p571, %s41, 0
          %s573 = sadd.s32 %s572, %s570
          %s574 = smul.addr %s573, 8
          %s575 = scalar_lea.vmem %s0, %s574
        $region76: #{tpu_custom_call.1} parent=71 // pred_fallthru
          _
        // Predicated region
        $region77: #{tpu_custom_call.1} parent=71 // pred_check
          %p576 = pneg %p93
        $region78: #{tpu_custom_call.1} parent=71 // pred_check_branch
          %578 = sbr.rel (%p576) target = $region80
        $region79: #{tpu_custom_call.1} parent=71 // pred_region
          %p579 = scmp.lt.s32.totalorder %s40, 1
          %s580 = scalar_select %p579, %s40, 1
          %s581 = smul.addr %s580, 8
          %s582 = scalar_lea.vmem %s1, %s581
        $region80: #{tpu_custom_call.1} parent=71 // pred_fallthru
          _
        // Predicated region
        $region81: #{tpu_custom_call.1} parent=71 // pred_check
          %p583 = pneg %p119
        $region82: #{tpu_custom_call.1} parent=71 // pred_check_branch
          %585 = sbr.rel (%p583) target = $region84
        $region83: #{tpu_custom_call.1} parent=71 // pred_region
          %s586 = sand.u32 %s109, 1
          %s587 = scalar_lea.sflag [#allocation5], %s586
          %s588 = sand.u32 %s109, 1
          %s589 = scalar_lea.vmem [#allocation4], %s588
          %s591 = ssub.s32 16, 16
          %592 = vsyncadd %s587, %s591
          %s593 = smul.addr %s40, 16
          %s594 = scalar_lea.hbm %s2, %s593
          %s596 = sshll.u32 %s589, 4
          %s597 = int_to_ptr.vmem [resolvable:$true] %s596
          %599 = dma.hbm_to_vmem [thread:$0]  %s594, 16, %s597, %s587
        $region84: #{tpu_custom_call.1} parent=71 // pred_fallthru
          _
      $region72: #{tpu_custom_call.1} parent=5 // pred_fallthru
        _
      %p600 = scmp.le.s32.totalorder 1, %s33
      %p601 = scmp.lt.s32.totalorder %s33, 3
      %p602 = pnand %p600, %p601
      %p603 = pneg %p602
      // Predicated region
      $region85: #{tpu_custom_call.1} parent=5 // pred_check
        _
      $region86: #{tpu_custom_call.1} parent=5 // pred_check_branch
        %605 = sbr.rel (%p602) target = $region88
      $region87: #{tpu_custom_call.1} parent=5 // pred_region
        %s606 = ssub.s32 %s33, 1
        %s607 = sand.u32 %s112, 1
        %s608 = scalar_lea.sflag [#allocation5], %s607
        %s609 = sand.u32 %s112, 1
        %s610 = scalar_lea.vmem [#allocation4], %s609
        // Predicated region
        $region89: #{tpu_custom_call.1} parent=87 // pred_check
          %p611 = pneg %p125
        $region90: #{tpu_custom_call.1} parent=87 // pred_check_branch
          %613 = sbr.rel (%p611) target = $region92
        $region91: #{tpu_custom_call.1} parent=87 // pred_region
          %614 = dma.done %s608, 16
        $region92: #{tpu_custom_call.1} parent=87 // pred_fallthru
          _
        // Predicated region
        $region93: #{tpu_custom_call.1} parent=87 // pred_check
          %p615 = pneg %p167
        $region94: #{tpu_custom_call.1} parent=87 // pred_check_branch
          %617 = sbr.rel (%p615) target = $region96
        $region95: #{tpu_custom_call.1} parent=87 // pred_region
          %618 = dma.done [#allocation8], 16
        $region96: #{tpu_custom_call.1} parent=87 // pred_fallthru
          _
        // Predicated region
        $region97: #{tpu_custom_call.1} parent=87 // pred_check
          %p619 = pneg %p188
        $region98: #{tpu_custom_call.1} parent=87 // pred_check_branch
          %621 = sbr.rel (%p619) target = $region100
        $region99: #{tpu_custom_call.1} parent=87 // pred_region
          %622 = dma.done [#allocation8], 16
        $region100: #{tpu_custom_call.1} parent=87 // pred_fallthru
          _
        // Predicated region
        $region101: #{tpu_custom_call.1} parent=87 // pred_check
          %p623 = pneg %p209
        $region102: #{tpu_custom_call.1} parent=87 // pred_check_branch
          %625 = sbr.rel (%p623) target = $region104
        $region103: #{tpu_custom_call.1} parent=87 // pred_region
          %626 = dma.done [#allocation11], 16
        $region104: #{tpu_custom_call.1} parent=87 // pred_fallthru
          _
        // Predicated region
        $region105: #{tpu_custom_call.1} parent=87 // pred_check
          %p627 = pneg %p251
        $region106: #{tpu_custom_call.1} parent=87 // pred_check_branch
          %629 = sbr.rel (%p627) target = $region108
        $region107: #{tpu_custom_call.1} parent=87 // pred_region
          %630 = dma.done [#allocation11], 16
        $region108: #{tpu_custom_call.1} parent=87 // pred_fallthru
          _
        // Predicated region
        $region109: #{tpu_custom_call.1} parent=87 // pred_check
          %p631 = pneg %p293
        $region110: #{tpu_custom_call.1} parent=87 // pred_check_branch
          %633 = sbr.rel (%p631) target = $region112
        $region111: #{tpu_custom_call.1} parent=87 // pred_region
          %634 = dma.done [#allocation14], 16
        $region112: #{tpu_custom_call.1} parent=87 // pred_fallthru
          _
        // Predicated region
        $region113: #{tpu_custom_call.1} parent=87 // pred_check
          %p635 = pneg %p314
        $region114: #{tpu_custom_call.1} parent=87 // pred_check_branch
          %637 = sbr.rel (%p635) target = $region116
        $region115: #{tpu_custom_call.1} parent=87 // pred_region
          %638 = dma.done [#allocation14], 256
        $region116: #{tpu_custom_call.1} parent=87 // pred_fallthru
          _
        // Predicated region
        $region117: #{tpu_custom_call.1} parent=87 // pred_check
          %p639 = pneg %p335
        $region118: #{tpu_custom_call.1} parent=87 // pred_check_branch
          %641 = sbr.rel (%p639) target = $region120
        $region119: #{tpu_custom_call.1} parent=87 // pred_region
          %642 = dma.done [#allocation17], 16
        $region120: #{tpu_custom_call.1} parent=87 // pred_fallthru
          _
        %p643 = scmp.lt.s32.totalorder %s42, 1
        %s644 = scalar_select %p643, %s42, 1
        %p645 = scmp.lt.s32.totalorder %s43, 0
        %s646 = scalar_select %p645, %s43, 0
        %s647 = sadd.s32 %s646, %s644
        %s648 = smul.addr %s647, 8
        %s649 = scalar_lea.vmem %s0, %s648
        %p650 = pneg %p73
        %p651 = pneg %p70
        %p652 = scmp.lt.s32.totalorder %s42, 1
        %s653 = scalar_select %p652, %s42, 1
        %s654 = smul.addr %s653, 8
        %s655 = scalar_lea.vmem %s1, %s654
        %p656 = pneg %p99
        %p657 = pneg %p96
        %s658 = sand.u32 %s112, 1
        %s659 = scalar_lea.sflag [#allocation5], %s658
        %s660 = sand.u32 %s112, 1
        %s661 = scalar_lea.vmem [#allocation4], %s660
        %p662 = pneg %p125
        %p663 = pneg %p122
        %p664 = pneg %p146
        %p665 = pneg %p143
        %p666 = pneg %p167
        %p667 = pneg %p164
        %p668 = pneg %p188
        %p669 = pneg %p185
        %p670 = pneg %p209
        %p671 = pneg %p206
        %p672 = pneg %p230
        %p673 = pneg %p227
        %p674 = pneg %p251
        %p675 = pneg %p248
        %p676 = pneg %p272
        %p677 = pneg %p269
        %p678 = pneg %p293
        %p679 = pneg %p290
        %p680 = pneg %p314
        %p681 = pneg %p311
        %p682 = pneg %p335
        %p683 = pneg %p332
        %p684 = pneg %p356
        %p685 = pneg %p353
        %p686 = pneg %p377
        %p687 = pneg %p374
        %p688 = pneg %p398
        %p689 = pneg %p395
        %p690 = pneg %p419
        %p691 = pneg %p416
        %p692 = pneg %p447
        %p693 = pneg %p444
        %s694 = sand.u32 %s434, 1
        %s695 = scalar_lea.sflag [#allocation6], %s694
        %s696 = sand.u32 %s434, 1
        %s697 = smul.addr %s696, 8
        %s698 = scalar_lea.vmem [#allocation18], %s697
        %p699 = scmp.lt.s32.totalorder %s42, 1
        %s700 = scalar_select %p699, %s42, 1
        %p701 = scmp.lt.s32.totalorder %s43, 0
        %s702 = scalar_select %p701, %s43, 0
        %s703 = sadd.s32 %s702, %s700
        %s704 = smul.addr %s703, 8
        %s705 = scalar_lea.vmem %s0, %s704
        %p706 = scmp.lt.s32.totalorder %s42, 1
        %s707 = scalar_select %p706, %s42, 1
        %s708 = smul.addr %s707, 8
        %s709 = scalar_lea.vmem %s1, %s708
        %v711 = vld [vmem:[%s3] sm:$0x1]
        %v712 = vld [vmem:[#allocation7] sm:$0x1]
        %p713 = scmp.eq.s32.totalorder %s43, 0
        // Predicated region
        $region121: #{tpu_custom_call.1} parent=87 // pred_check
          %p714 = pneg %p713
        $region122: #{tpu_custom_call.1} parent=87 // pred_check_branch
          %716 = sbr.rel (%p714) target = $region124
        $region123: #{tpu_custom_call.1} parent=87 // pred_region
          %v717 = vld [vmem:[%s709] sm:$0xff]
          %vm718 = vcmask 261120
          %v719 = vsel %vm718, %v717, 0.0
          %720 = vadd.xlane.f32.xlu0 %v719
          %v721 = vpop.xlane.xlu0 %720
          %v722 = vrcp.pop 32.0
          %v723 = vmul.f32 %v721, %v722
          %v724 = vsub.f32 %v717, %v723
          %v725 = vmul.f32 %v724, %v724
          %v726 = vsel %vm718, %v725, 0.0
          %727 = vadd.xlane.f32.xlu0 %v726
          %v728 = vpop.xlane.xlu0 %727
          %v729 = vmul.f32 %v728, %v722
          %v730 = vadd.f32 %v729, 1e-05
          %v731 = vrsqrt.pop %v730
          %v732 = vmul.f32 %v724, %v731
          %v734 = vlaneseq
          %v735 = vshrl.u32 %v734, 7
          %v736 = vsub.s32 0, %v735
          %v737 = vrot.slane %v711, %v736
          %v739 = vmul.f32 %v732, %v737
          %v741 = vlaneseq
          %v742 = vshrl.u32 %v741, 7
          %v743 = vsub.s32 0, %v742
          %v744 = vrot.slane %v712, %v743
          %v746 = vadd.f32 %v739, %v744
          %v747 = vpack.c.bf16 %v746, %v746
          %v748 = vld [vmem:[%s9] sm:$0xf]
          %v749 = vld [vmem:[%s9 + $0x4] sm:$0xf]
          %v750 = vld [vmem:[%s9 + $0x8] sm:$0xf]
          %v751 = vld [vmem:[%s9 + $0xc] sm:$0xf]
          %v752 = vld [vmem:[#allocation13] sm:$0x1]
          %v754 = vlaneseq
          %v755 = vshrl.u32 %v754, 7
          %v756 = vsub.s32 0, %v755
          %v757 = vrot.slane %v752, %v756
          %v763 = vunpack.c.l.b16 %v748
          %v764 = vunpack.c.l.b16 %v749
          %v765 = vunpack.c.l.b16 %v750
          %v766 = vunpack.c.l.b16 %v751
          %v767 = vpack.c.b16 %v764, %v763
          %v768 = vpack.c.b16 %v766, %v765
          %v772 = vsel %vm718, %v747, 0
          %774 = vmatprep.subr.bf16.mxu0 0
          %775 = vmatpush1.bf16.msra.mxu0 %v767
          %776 = vmatprep.subr.bf16.mxu0 0
          %777 = vmatpush1.bf16.msra.mxu0 %v768
          %778 = vmatprep.subr.bf16.mxu0 0
          %779 = vmatpush1.bf16.msra.mxu0 0
          %780 = vmatprep.subr.bf16.mxu0 0
          %781 = vmatpush1.bf16.msra.mxu0 0
          %782 = vmatprep.subr.bf16.mxu0 0
          %783 = vmatpush1.bf16.msra.mxu0 0
          %784 = vmatprep.subr.bf16.mxu0 0
          %785 = vmatpush1.bf16.msra.mxu0 0
          %786 = vmatprep.subr.bf16.mxu0 0
          %787 = vmatpush1.bf16.msra.mxu0 0
          %788 = vmatprep.subr.bf16.mxu0 0
          %789 = vmatpush1.bf16.msra.mxu0 0
          %790 = vmatprep.subr.bf16.mxu0 0
          %791 = vmatpush1.bf16.msra.mxu0 0
          %792 = vmatprep.subr.bf16.mxu0 0
          %793 = vmatpush1.bf16.msra.mxu0 0
          %794 = vmatprep.subr.bf16.mxu0 0
          %795 = vmatpush1.bf16.msra.mxu0 0
          %796 = vmatprep.subr.bf16.mxu0 0
          %797 = vmatpush1.bf16.msra.mxu0 0
          %798 = vmatprep.subr.bf16.mxu0 0
          %799 = vmatpush1.bf16.msra.mxu0 0
          %800 = vmatprep.subr.bf16.mxu0 0
          %801 = vmatpush1.bf16.msra.mxu0 0
          %802 = vmatprep.subr.bf16.mxu0 0
          %803 = vmatpush1.bf16.msra.mxu0 0
          %804 = vmatprep.subr.bf16.mxu0 0
          %805 = vmatpush1.bf16.msra.mxu0 0
          %806 = vmatprep.mubr.bf16.mxu0 0
          %807 = vmatmul.mubr.bf16.gmra.mrb[0].mxu0 %v772
          %v808 = vpop.f32.mrb[0].mxu0
          %v809 = vadd.f32 %v757, %v808
          %v810 = vpop.f32.mrb[0].mxu0
          %v811 = vpop.f32.mrb[0].mxu0
          %v812 = vpop.f32.mrb[0].mxu0
          %813 = vdwg.mxu0
          %v814 = vpack.c.bf16 %v809, %v809
          %vm815 = vcmask 519168
          %816 = vst.msk [vmem:[#allocation2] sm:$0xf] %vm815, %v814
        $region124: #{tpu_custom_call.1} parent=87 // pred_fallthru
          _
        %v817 = vld [vmem:[%s705] sm:$0xff]
        %vm818 = vcmask 261120
        %v819 = vsel %vm818, %v817, 0.0
        %820 = vadd.xlane.f32.xlu0 %v819
        %v821 = vpop.xlane.xlu0 %820
        %v822 = vrcp.pop 32.0
        %v823 = vmul.f32 %v821, %v822
        %v824 = vsub.f32 %v817, %v823
        %v825 = vmul.f32 %v824, %v824
        %v826 = vsel %vm818, %v825, 0.0
        %827 = vadd.xlane.f32.xlu0 %v826
        %v828 = vpop.xlane.xlu0 %827
        %v829 = vmul.f32 %v828, %v822
        %v830 = vadd.f32 %v829, 1e-05
        %v831 = vrsqrt.pop %v830
        %v832 = vmul.f32 %v824, %v831
        %v834 = vlaneseq
        %v835 = vshrl.u32 %v834, 7
        %v836 = vsub.s32 0, %v835
        %v837 = vrot.slane %v711, %v836
        %v839 = vmul.f32 %v832, %v837
        %v841 = vlaneseq
        %v842 = vshrl.u32 %v841, 7
        %v843 = vsub.s32 0, %v842
        %v844 = vrot.slane %v712, %v843
        %v846 = vadd.f32 %v839, %v844
        %v847 = vpack.c.bf16 %v846, %v846
        %v848 = vld [vmem:[%s7] sm:$0xf]
        %v849 = vld [vmem:[%s7 + $0x4] sm:$0xf]
        %v850 = vld [vmem:[%s7 + $0x8] sm:$0xf]
        %v851 = vld [vmem:[%s7 + $0xc] sm:$0xf]
        %v852 = vld [vmem:[#allocation12] sm:$0x1]
        %v854 = vlaneseq
        %v855 = vshrl.u32 %v854, 7
        %v856 = vsub.s32 0, %v855
        %v857 = vrot.slane %v852, %v856
        %v863 = vunpack.c.l.b16 %v848
        %v864 = vunpack.c.l.b16 %v849
        %v865 = vunpack.c.l.b16 %v850
        %v866 = vunpack.c.l.b16 %v851
        %v867 = vpack.c.b16 %v864, %v863
        %v868 = vpack.c.b16 %v866, %v865
        %v872 = vsel %vm818, %v847, 0
        %874 = vmatprep.subr.bf16.mxu0 0
        %875 = vmatpush1.bf16.msra.mxu0 %v867
        %876 = vmatprep.subr.bf16.mxu0 0
        %877 = vmatpush1.bf16.msra.mxu0 %v868
        %878 = vmatprep.subr.bf16.mxu0 0
        %879 = vmatpush1.bf16.msra.mxu0 0
        %880 = vmatprep.subr.bf16.mxu0 0
        %881 = vmatpush1.bf16.msra.mxu0 0
        %882 = vmatprep.subr.bf16.mxu0 0
        %883 = vmatpush1.bf16.msra.mxu0 0
        %884 = vmatprep.subr.bf16.mxu0 0
        %885 = vmatpush1.bf16.msra.mxu0 0
        %886 = vmatprep.subr.bf16.mxu0 0
        %887 = vmatpush1.bf16.msra.mxu0 0
        %888 = vmatprep.subr.bf16.mxu0 0
        %889 = vmatpush1.bf16.msra.mxu0 0
        %890 = vmatprep.subr.bf16.mxu0 0
        %891 = vmatpush1.bf16.msra.mxu0 0
        %892 = vmatprep.subr.bf16.mxu0 0
        %893 = vmatpush1.bf16.msra.mxu0 0
        %894 = vmatprep.subr.bf16.mxu0 0
        %895 = vmatpush1.bf16.msra.mxu0 0
        %896 = vmatprep.subr.bf16.mxu0 0
        %897 = vmatpush1.bf16.msra.mxu0 0
        %898 = vmatprep.subr.bf16.mxu0 0
        %899 = vmatpush1.bf16.msra.mxu0 0
        %900 = vmatprep.subr.bf16.mxu0 0
        %901 = vmatpush1.bf16.msra.mxu0 0
        %902 = vmatprep.subr.bf16.mxu0 0
        %903 = vmatpush1.bf16.msra.mxu0 0
        %904 = vmatprep.subr.bf16.mxu0 0
        %905 = vmatpush1.bf16.msra.mxu0 0
        %906 = vmatprep.mubr.bf16.mxu0 0
        %907 = vmatmul.mubr.bf16.gmra.mrb[0].mxu0 %v872
        %v908 = vpop.f32.mrb[0].mxu0
        %v909 = vadd.f32 %v857, %v908
        %v910 = vpop.f32.mrb[0].mxu0
        %v911 = vpop.f32.mrb[0].mxu0
        %v912 = vpop.f32.mrb[0].mxu0
        %913 = vdwg.mxu0
        %v914 = vpack.c.bf16 %v909, %v909
        %v915 = vld [vmem:[%s610] sm:$0x1]
        %vm916 = vcmp.eq.f32.partialorder %v915, 0.0
        %v917 = vsel %vm916, -1e+09, 0.0
        %v918 = vld [vmem:[#allocation2] sm:$0xf]
        %v920 = vlaneseq
        %v921 = vshrl.u32 %v920, 7
        %v922 = vsub.s32 0, %v921
        %v923 = vrot.slane %v917, %v922
        %vm925 = vcmask 64512
        %v927 = vsel %vm925, %v914, 0
        %v930 = vsel %vm925, %v918, 0
        %932 = vmatprep.subr.bf16.mxu0 0
        %933 = vmatpush1.bf16.xpose.msra.mxu0 %v930
        %934 = vmatprep.subr.bf16.mxu0 0
        %935 = vmatpush1.bf16.xpose.msra.mxu0 0
        %936 = vmatprep.subr.bf16.mxu0 0
        %937 = vmatpush1.bf16.xpose.msra.mxu0 0
        %938 = vmatprep.subr.bf16.mxu0 0
        %939 = vmatpush1.bf16.xpose.msra.mxu0 0
        %940 = vmatprep.subr.bf16.mxu0 0
        %941 = vmatpush1.bf16.xpose.msra.mxu0 0
        %942 = vmatprep.subr.bf16.mxu0 0
        %943 = vmatpush1.bf16.xpose.msra.mxu0 0
        %944 = vmatprep.subr.bf16.mxu0 0
        %945 = vmatpush1.bf16.xpose.msra.mxu0 0
        %946 = vmatprep.subr.bf16.mxu0 0
        %947 = vmatpush1.bf16.xpose.msra.mxu0 0
        %948 = vmatprep.subr.bf16.mxu0 0
        %949 = vmatpush1.bf16.xpose.msra.mxu0 0
        %950 = vmatprep.subr.bf16.mxu0 0
        %951 = vmatpush1.bf16.xpose.msra.mxu0 0
        %952 = vmatprep.subr.bf16.mxu0 0
        %953 = vmatpush1.bf16.xpose.msra.mxu0 0
        %954 = vmatprep.subr.bf16.mxu0 0
        %955 = vmatpush1.bf16.xpose.msra.mxu0 0
        %956 = vmatprep.subr.bf16.mxu0 0
        %957 = vmatpush1.bf16.xpose.msra.mxu0 0
        %958 = vmatprep.subr.bf16.mxu0 0
        %959 = vmatpush1.bf16.xpose.msra.mxu0 0
        %960 = vmatprep.subr.bf16.mxu0 0
        %961 = vmatpush1.bf16.xpose.msra.mxu0 0
        %962 = vmatprep.subr.bf16.mxu0 0
        %963 = vmatpush1.bf16.xpose.msra.mxu0 0
        %964 = vmatprep.mubr.bf16.mxu0 0
        %965 = vmatmul.mubr.bf16.gmra.mrb[0].mxu0 %v927
        %v966 = vpop.f32.mrb[0].mxu0
        %v967 = vadd.f32 %v923, %v966
        %v968 = vpop.f32.mrb[0].mxu0
        %v969 = vpop.f32.mrb[0].mxu0
        %v970 = vpop.f32.mrb[0].mxu0
        %971 = vdwg.mxu0
        %v972 = vsel %vm925, %v967, -inf
        %973 = vmax.xlane.f32.xlu0 %v972
        %v974 = vpop.xlane.xlu0 %973
        %v975 = vsub.f32 %v967, %v974
        %v976 = vmul.f32 %v975, 1.442695
        %v977 = vpow.pop %v976
        %v978 = vsel %vm925, %v977, 0.0
        %979 = vadd.xlane.f32.xlu0 %v978
        %v980 = vpop.xlane.xlu0 %979
        %v981 = vpack.c.bf16 %v977, %v977
        %v983 = vunpack.c.l.b16 %v918
        %v984 = vpack.c.b16 %v983, %v983
        %985 = vrot.lane.b32.xlu0 %v984, 96
        %v986 = vpop.permute.xlu0 %985
        %v988 = vsel %vm925, %v981, 0
        %vm990 = vcmask 1043456
        %v992 = vsel %vm990, %v986, 0
        %994 = vmatprep.subr.bf16.mxu0 0
        %995 = vmatpush1.bf16.msra.mxu0 %v992
        %996 = vmatprep.subr.bf16.mxu0 0
        %997 = vmatpush1.bf16.msra.mxu0 0
        %998 = vmatprep.subr.bf16.mxu0 0
        %999 = vmatpush1.bf16.msra.mxu0 0
        %1000 = vmatprep.subr.bf16.mxu0 0
        %1001 = vmatpush1.bf16.msra.mxu0 0
        %1002 = vmatprep.subr.bf16.mxu0 0
        %1003 = vmatpush1.bf16.msra.mxu0 0
        %1004 = vmatprep.subr.bf16.mxu0 0
        %1005 = vmatpush1.bf16.msra.mxu0 0
        %1006 = vmatprep.subr.bf16.mxu0 0
        %1007 = vmatpush1.bf16.msra.mxu0 0
        %1008 = vmatprep.subr.bf16.mxu0 0
        %1009 = vmatpush1.bf16.msra.mxu0 0
        %1010 = vmatprep.subr.bf16.mxu0 0
        %1011 = vmatpush1.bf16.msra.mxu0 0
        %1012 = vmatprep.subr.bf16.mxu0 0
        %1013 = vmatpush1.bf16.msra.mxu0 0
        %1014 = vmatprep.subr.bf16.mxu0 0
        %1015 = vmatpush1.bf16.msra.mxu0 0
        %1016 = vmatprep.subr.bf16.mxu0 0
        %1017 = vmatpush1.bf16.msra.mxu0 0
        %1018 = vmatprep.subr.bf16.mxu0 0
        %1019 = vmatpush1.bf16.msra.mxu0 0
        %1020 = vmatprep.subr.bf16.mxu0 0
        %1021 = vmatpush1.bf16.msra.mxu0 0
        %1022 = vmatprep.subr.bf16.mxu0 0
        %1023 = vmatpush1.bf16.msra.mxu0 0
        %1024 = vmatprep.subr.bf16.mxu0 0
        %1025 = vmatpush1.bf16.msra.mxu0 0
        %1026 = vmatprep.mubr.bf16.mxu0 0
        %1027 = vmatmul.mubr.bf16.gmra.mrb[0].mxu0 %v988
        %v1028 = vpop.f32.mrb[0].mxu0
        %v1029 = vadd.f32 0.0, %v1028
        %v1030 = vpop.f32.mrb[0].mxu0
        %v1031 = vpop.f32.mrb[0].mxu0
        %v1032 = vpop.f32.mrb[0].mxu0
        %1033 = vdwg.mxu0
        %v1034 = vrcp.pop %v980
        %v1035 = vmul.f32 %v1029, %v1034
        %1036 = vst.msk [vmem:[#allocation3] sm:$0xff] %vm925, %v1035
        %v1037 = vld [vmem:[#allocation2] sm:$0xf]
        %1039 = vrot.lane.b32.xlu0 %v914, 120
        %v1040 = vpop.permute.xlu0 %1039
        %v1042 = vunpack.c.l.b16 %v1037
        %v1043 = vpack.c.b16 %v1042, %v1042
        %1044 = vrot.lane.b32.xlu0 %v1043, 120
        %v1045 = vpop.permute.xlu0 %1044
        %v1047 = vsel %vm925, %v1040, 0
        %v1050 = vsel %vm925, %v1045, 0
        %1052 = vmatprep.subr.bf16.mxu0 0
        %1053 = vmatpush1.bf16.xpose.msra.mxu0 %v1050
        %1054 = vmatprep.subr.bf16.mxu0 0
        %1055 = vmatpush1.bf16.xpose.msra.mxu0 0
        %1056 = vmatprep.subr.bf16.mxu0 0
        %1057 = vmatpush1.bf16.xpose.msra.mxu0 0
        %1058 = vmatprep.subr.bf16.mxu0 0
        %1059 = vmatpush1.bf16.xpose.msra.mxu0 0
        %1060 = vmatprep.subr.bf16.mxu0 0
        %1061 = vmatpush1.bf16.xpose.msra.mxu0 0
        %1062 = vmatprep.subr.bf16.mxu0 0
        %1063 = vmatpush1.bf16.xpose.msra.mxu0 0
        %1064 = vmatprep.subr.bf16.mxu0 0
        %1065 = vmatpush1.bf16.xpose.msra.mxu0 0
        %1066 = vmatprep.subr.bf16.mxu0 0
        %1067 = vmatpush1.bf16.xpose.msra.mxu0 0
        %1068 = vmatprep.subr.bf16.mxu0 0
        %1069 = vmatpush1.bf16.xpose.msra.mxu0 0
        %1070 = vmatprep.subr.bf16.mxu0 0
        %1071 = vmatpush1.bf16.xpose.msra.mxu0 0
        %1072 = vmatprep.subr.bf16.mxu0 0
        %1073 = vmatpush1.bf16.xpose.msra.mxu0 0
        %1074 = vmatprep.subr.bf16.mxu0 0
        %1075 = vmatpush1.bf16.xpose.msra.mxu0 0
        %1076 = vmatprep.subr.bf16.mxu0 0
        %1077 = vmatpush1.bf16.xpose.msra.mxu0 0
        %1078 = vmatprep.subr.bf16.mxu0 0
        %1079 = vmatpush1.bf16.xpose.msra.mxu0 0
        %1080 = vmatprep.subr.bf16.mxu0 0
        %1081 = vmatpush1.bf16.xpose.msra.mxu0 0
        %1082 = vmatprep.subr.bf16.mxu0 0
        %1083 = vmatpush1.bf16.xpose.msra.mxu0 0
        %1084 = vmatprep.mubr.bf16.mxu0 0
        %1085 = vmatmul.mubr.bf16.gmra.mrb[0].mxu0 %v1047
        %v1086 = vpop.f32.mrb[0].mxu0
        %v1087 = vadd.f32 %v923, %v1086
        %v1088 = vpop.f32.mrb[0].mxu0
        %v1089 = vpop.f32.mrb[0].mxu0
        %v1090 = vpop.f32.mrb[0].mxu0
        %1091 = vdwg.mxu0
        %v1092 = vsel %vm925, %v1087, -inf
        %1093 = vmax.xlane.f32.xlu0 %v1092
        %v1094 = vpop.xlane.xlu0 %1093
        %v1095 = vsub.f32 %v1087, %v1094
        %v1096 = vmul.f32 %v1095, 1.442695
        %v1097 = vpow.pop %v1096
        %v1098 = vsel %vm925, %v1097, 0.0
        %1099 = vadd.xlane.f32.xlu0 %v1098
        %v1100 = vpop.xlane.xlu0 %1099
        %v1101 = vpack.c.bf16 %v1097, %v1097
        %1102 = vrot.lane.b32.xlu0 %v1043, 88
        %v1103 = vpop.permute.xlu0 %1102
        %v1105 = vsel %vm925, %v1101, 0
        %v1108 = vsel %vm990, %v1103, 0
        %1110 = vmatprep.subr.bf16.mxu0 0
        %1111 = vmatpush1.bf16.msra.mxu0 %v1108
        %1112 = vmatprep.subr.bf16.mxu0 0
        %1113 = vmatpush1.bf16.msra.mxu0 0
        %1114 = vmatprep.subr.bf16.mxu0 0
        %1115 = vmatpush1.bf16.msra.mxu0 0
        %1116 = vmatprep.subr.bf16.mxu0 0
        %1117 = vmatpush1.bf16.msra.mxu0 0
        %1118 = vmatprep.subr.bf16.mxu0 0
        %1119 = vmatpush1.bf16.msra.mxu0 0
        %1120 = vmatprep.subr.bf16.mxu0 0
        %1121 = vmatpush1.bf16.msra.mxu0 0
        %1122 = vmatprep.subr.bf16.mxu0 0
        %1123 = vmatpush1.bf16.msra.mxu0 0
        %1124 = vmatprep.subr.bf16.mxu0 0
        %1125 = vmatpush1.bf16.msra.mxu0 0
        %1126 = vmatprep.subr.bf16.mxu0 0
        %1127 = vmatpush1.bf16.msra.mxu0 0
        %1128 = vmatprep.subr.bf16.mxu0 0
        %1129 = vmatpush1.bf16.msra.mxu0 0
        %1130 = vmatprep.subr.bf16.mxu0 0
        %1131 = vmatpush1.bf16.msra.mxu0 0
        %1132 = vmatprep.subr.bf16.mxu0 0
        %1133 = vmatpush1.bf16.msra.mxu0 0
        %1134 = vmatprep.subr.bf16.mxu0 0
        %1135 = vmatpush1.bf16.msra.mxu0 0
        %1136 = vmatprep.subr.bf16.mxu0 0
        %1137 = vmatpush1.bf16.msra.mxu0 0
        %1138 = vmatprep.subr.bf16.mxu0 0
        %1139 = vmatpush1.bf16.msra.mxu0 0
        %1140 = vmatprep.subr.bf16.mxu0 0
        %1141 = vmatpush1.bf16.msra.mxu0 0
        %1142 = vmatprep.mubr.bf16.mxu0 0
        %1143 = vmatmul.mubr.bf16.gmra.mrb[0].mxu0 %v1105
        %v1144 = vpop.f32.mrb[0].mxu0
        %v1145 = vadd.f32 0.0, %v1144
        %v1146 = vpop.f32.mrb[0].mxu0
        %v1147 = vpop.f32.mrb[0].mxu0
        %v1148 = vpop.f32.mrb[0].mxu0
        %1149 = vdwg.mxu0
        %v1150 = vrcp.pop %v1100
        %v1151 = vmul.f32 %v1145, %v1150
        %1153 = vrot.lane.b32.xlu0 %v1151, 8
        %v1154 = vpop.permute.xlu0 %1153
        %vm1156 = vcmask 130112
        %1157 = vst.msk [vmem:[#allocation3] sm:$0xff] %vm1156, %v1154
        %v1158 = vld [vmem:[#allocation2] sm:$0xf]
        %1159 = vrot.lane.b32.xlu0 %v914, 112
        %v1160 = vpop.permute.xlu0 %1159
        %v1162 = vunpack.c.l.b16 %v1158
        %v1163 = vpack.c.b16 %v1162, %v1162
        %1164 = vrot.lane.b32.xlu0 %v1163, 112
        %v1165 = vpop.permute.xlu0 %1164
        %v1167 = vsel %vm925, %v1160, 0
        %v1170 = vsel %vm925, %v1165, 0
        %1172 = vmatprep.subr.bf16.mxu0 0
        %1173 = vmatpush1.bf16.xpose.msra.mxu0 %v1170
        %1174 = vmatprep.subr.bf16.mxu0 0
        %1175 = vmatpush1.bf16.xpose.msra.mxu0 0
        %1176 = vmatprep.subr.bf16.mxu0 0
        %1177 = vmatpush1.bf16.xpose.msra.mxu0 0
        %1178 = vmatprep.subr.bf16.mxu0 0
        %1179 = vmatpush1.bf16.xpose.msra.mxu0 0
        %1180 = vmatprep.subr.bf16.mxu0 0
        %1181 = vmatpush1.bf16.xpose.msra.mxu0 0
        %1182 = vmatprep.subr.bf16.mxu0 0
        %1183 = vmatpush1.bf16.xpose.msra.mxu0 0
        %1184 = vmatprep.subr.bf16.mxu0 0
        %1185 = vmatpush1.bf16.xpose.msra.mxu0 0
        %1186 = vmatprep.subr.bf16.mxu0 0
        %1187 = vmatpush1.bf16.xpose.msra.mxu0 0
        %1188 = vmatprep.subr.bf16.mxu0 0
        %1189 = vmatpush1.bf16.xpose.msra.mxu0 0
        %1190 = vmatprep.subr.bf16.mxu0 0
        %1191 = vmatpush1.bf16.xpose.msra.mxu0 0
        %1192 = vmatprep.subr.bf16.mxu0 0
        %1193 = vmatpush1.bf16.xpose.msra.mxu0 0
        %1194 = vmatprep.subr.bf16.mxu0 0
        %1195 = vmatpush1.bf16.xpose.msra.mxu0 0
        %1196 = vmatprep.subr.bf16.mxu0 0
        %1197 = vmatpush1.bf16.xpose.msra.mxu0 0
        %1198 = vmatprep.subr.bf16.mxu0 0
        %1199 = vmatpush1.bf16.xpose.msra.mxu0 0
        %1200 = vmatprep.subr.bf16.mxu0 0
        %1201 = vmatpush1.bf16.xpose.msra.mxu0 0
        %1202 = vmatprep.subr.bf16.mxu0 0
        %1203 = vmatpush1.bf16.xpose.msra.mxu0 0
        %1204 = vmatprep.mubr.bf16.mxu0 0
        %1205 = vmatmul.mubr.bf16.gmra.mrb[0].mxu0 %v1167
        %v1206 = vpop.f32.mrb[0].mxu0
        %v1207 = vadd.f32 %v923, %v1206
        %v1208 = vpop.f32.mrb[0].mxu0
        %v1209 = vpop.f32.mrb[0].mxu0
        %v1210 = vpop.f32.mrb[0].mxu0
        %1211 = vdwg.mxu0
        %v1212 = vsel %vm925, %v1207, -inf
        %1213 = vmax.xlane.f32.xlu0 %v1212
        %v1214 = vpop.xlane.xlu0 %1213
        %v1215 = vsub.f32 %v1207, %v1214
        %v1216 = vmul.f32 %v1215, 1.442695
        %v1217 = vpow.pop %v1216
        %v1218 = vsel %vm925, %v1217, 0.0
        %1219 = vadd.xlane.f32.xlu0 %v1218
        %v1220 = vpop.xlane.xlu0 %1219
        %v1221 = vpack.c.bf16 %v1217, %v1217
        %1222 = vrot.lane.b32.xlu0 %v1163, 80
        %v1223 = vpop.permute.xlu0 %1222
        %v1225 = vsel %vm925, %v1221, 0
        %v1228 = vsel %vm990, %v1223, 0
        %1230 = vmatprep.subr.bf16.mxu0 0
        %1231 = vmatpush1.bf16.msra.mxu0 %v1228
        %1232 = vmatprep.subr.bf16.mxu0 0
        %1233 = vmatpush1.bf16.msra.mxu0 0
        %1234 = vmatprep.subr.bf16.mxu0 0
        %1235 = vmatpush1.bf16.msra.mxu0 0
        %1236 = vmatprep.subr.bf16.mxu0 0
        %1237 = vmatpush1.bf16.msra.mxu0 0
        %1238 = vmatprep.subr.bf16.mxu0 0
        %1239 = vmatpush1.bf16.msra.mxu0 0
        %1240 = vmatprep.subr.bf16.mxu0 0
        %1241 = vmatpush1.bf16.msra.mxu0 0
        %1242 = vmatprep.subr.bf16.mxu0 0
        %1243 = vmatpush1.bf16.msra.mxu0 0
        %1244 = vmatprep.subr.bf16.mxu0 0
        %1245 = vmatpush1.bf16.msra.mxu0 0
        %1246 = vmatprep.subr.bf16.mxu0 0
        %1247 = vmatpush1.bf16.msra.mxu0 0
        %1248 = vmatprep.subr.bf16.mxu0 0
        %1249 = vmatpush1.bf16.msra.mxu0 0
        %1250 = vmatprep.subr.bf16.mxu0 0
        %1251 = vmatpush1.bf16.msra.mxu0 0
        %1252 = vmatprep.subr.bf16.mxu0 0
        %1253 = vmatpush1.bf16.msra.mxu0 0
        %1254 = vmatprep.subr.bf16.mxu0 0
        %1255 = vmatpush1.bf16.msra.mxu0 0
        %1256 = vmatprep.subr.bf16.mxu0 0
        %1257 = vmatpush1.bf16.msra.mxu0 0
        %1258 = vmatprep.subr.bf16.mxu0 0
        %1259 = vmatpush1.bf16.msra.mxu0 0
        %1260 = vmatprep.subr.bf16.mxu0 0
        %1261 = vmatpush1.bf16.msra.mxu0 0
        %1262 = vmatprep.mubr.bf16.mxu0 0
        %1263 = vmatmul.mubr.bf16.gmra.mrb[0].mxu0 %v1225
        %v1264 = vpop.f32.mrb[0].mxu0
        %v1265 = vadd.f32 0.0, %v1264
        %v1266 = vpop.f32.mrb[0].mxu0
        %v1267 = vpop.f32.mrb[0].mxu0
        %v1268 = vpop.f32.mrb[0].mxu0
        %1269 = vdwg.mxu0
        %v1270 = vrcp.pop %v1220
        %v1271 = vmul.f32 %v1265, %v1270
        %1273 = vrot.lane.b32.xlu0 %v1271, 16
        %v1274 = vpop.permute.xlu0 %1273
        %vm1276 = vcmask 195712
        %1277 = vst.msk [vmem:[#allocation3] sm:$0xff] %vm1276, %v1274
        %v1278 = vld [vmem:[#allocation2] sm:$0xf]
        %1279 = vrot.lane.b32.xlu0 %v914, 104
        %v1280 = vpop.permute.xlu0 %1279
        %v1282 = vunpack.c.l.b16 %v1278
        %v1283 = vpack.c.b16 %v1282, %v1282
        %1284 = vrot.lane.b32.xlu0 %v1283, 104
        %v1285 = vpop.permute.xlu0 %1284
        %v1287 = vsel %vm925, %v1280, 0
        %v1290 = vsel %vm925, %v1285, 0
        %1292 = vmatprep.subr.bf16.mxu0 0
        %1293 = vmatpush1.bf16.xpose.msra.mxu0 %v1290
        %1294 = vmatprep.subr.bf16.mxu0 0
        %1295 = vmatpush1.bf16.xpose.msra.mxu0 0
        %1296 = vmatprep.subr.bf16.mxu0 0
        %1297 = vmatpush1.bf16.xpose.msra.mxu0 0
        %1298 = vmatprep.subr.bf16.mxu0 0
        %1299 = vmatpush1.bf16.xpose.msra.mxu0 0
        %1300 = vmatprep.subr.bf16.mxu0 0
        %1301 = vmatpush1.bf16.xpose.msra.mxu0 0
        %1302 = vmatprep.subr.bf16.mxu0 0
        %1303 = vmatpush1.bf16.xpose.msra.mxu0 0
        %1304 = vmatprep.subr.bf16.mxu0 0
        %1305 = vmatpush1.bf16.xpose.msra.mxu0 0
        %1306 = vmatprep.subr.bf16.mxu0 0
        %1307 = vmatpush1.bf16.xpose.msra.mxu0 0
        %1308 = vmatprep.subr.bf16.mxu0 0
        %1309 = vmatpush1.bf16.xpose.msra.mxu0 0
        %1310 = vmatprep.subr.bf16.mxu0 0
        %1311 = vmatpush1.bf16.xpose.msra.mxu0 0
        %1312 = vmatprep.subr.bf16.mxu0 0
        %1313 = vmatpush1.bf16.xpose.msra.mxu0 0
        %1314 = vmatprep.subr.bf16.mxu0 0
        %1315 = vmatpush1.bf16.xpose.msra.mxu0 0
        %1316 = vmatprep.subr.bf16.mxu0 0
        %1317 = vmatpush1.bf16.xpose.msra.mxu0 0
        %1318 = vmatprep.subr.bf16.mxu0 0
        %1319 = vmatpush1.bf16.xpose.msra.mxu0 0
        %1320 = vmatprep.subr.bf16.mxu0 0
        %1321 = vmatpush1.bf16.xpose.msra.mxu0 0
        %1322 = vmatprep.subr.bf16.mxu0 0
        %1323 = vmatpush1.bf16.xpose.msra.mxu0 0
        %1324 = vmatprep.mubr.bf16.mxu0 0
        %1325 = vmatmul.mubr.bf16.gmra.mrb[0].mxu0 %v1287
        %v1326 = vpop.f32.mrb[0].mxu0
        %v1327 = vadd.f32 %v923, %v1326
        %v1328 = vpop.f32.mrb[0].mxu0
        %v1329 = vpop.f32.mrb[0].mxu0
        %v1330 = vpop.f32.mrb[0].mxu0
        %1331 = vdwg.mxu0
        %v1332 = vsel %vm925, %v1327, -inf
        %1333 = vmax.xlane.f32.xlu0 %v1332
        %v1334 = vpop.xlane.xlu0 %1333
        %v1335 = vsub.f32 %v1327, %v1334
        %v1336 = vmul.f32 %v1335, 1.442695
        %v1337 = vpow.pop %v1336
        %v1338 = vsel %vm925, %v1337, 0.0
        %1339 = vadd.xlane.f32.xlu0 %v1338
        %v1340 = vpop.xlane.xlu0 %1339
        %v1341 = vpack.c.bf16 %v1337, %v1337
        %1342 = vrot.lane.b32.xlu0 %v1283, 72
        %v1343 = vpop.permute.xlu0 %1342
        %v1345 = vsel %vm925, %v1341, 0
        %v1348 = vsel %vm990, %v1343, 0
        %1350 = vmatprep.subr.bf16.mxu0 0
        %1351 = vmatpush1.bf16.msra.mxu0 %v1348
        %1352 = vmatprep.subr.bf16.mxu0 0
        %1353 = vmatpush1.bf16.msra.mxu0 0
        %1354 = vmatprep.subr.bf16.mxu0 0
        %1355 = vmatpush1.bf16.msra.mxu0 0
        %1356 = vmatprep.subr.bf16.mxu0 0
        %1357 = vmatpush1.bf16.msra.mxu0 0
        %1358 = vmatprep.subr.bf16.mxu0 0
        %1359 = vmatpush1.bf16.msra.mxu0 0
        %1360 = vmatprep.subr.bf16.mxu0 0
        %1361 = vmatpush1.bf16.msra.mxu0 0
        %1362 = vmatprep.subr.bf16.mxu0 0
        %1363 = vmatpush1.bf16.msra.mxu0 0
        %1364 = vmatprep.subr.bf16.mxu0 0
        %1365 = vmatpush1.bf16.msra.mxu0 0
        %1366 = vmatprep.subr.bf16.mxu0 0
        %1367 = vmatpush1.bf16.msra.mxu0 0
        %1368 = vmatprep.subr.bf16.mxu0 0
        %1369 = vmatpush1.bf16.msra.mxu0 0
        %1370 = vmatprep.subr.bf16.mxu0 0
        %1371 = vmatpush1.bf16.msra.mxu0 0
        %1372 = vmatprep.subr.bf16.mxu0 0
        %1373 = vmatpush1.bf16.msra.mxu0 0
        %1374 = vmatprep.subr.bf16.mxu0 0
        %1375 = vmatpush1.bf16.msra.mxu0 0
        %1376 = vmatprep.subr.bf16.mxu0 0
        %1377 = vmatpush1.bf16.msra.mxu0 0
        %1378 = vmatprep.subr.bf16.mxu0 0
        %1379 = vmatpush1.bf16.msra.mxu0 0
        %1380 = vmatprep.subr.bf16.mxu0 0
        %1381 = vmatpush1.bf16.msra.mxu0 0
        %1382 = vmatprep.mubr.bf16.mxu0 0
        %1383 = vmatmul.mubr.bf16.gmra.mrb[0].mxu0 %v1345
        %v1384 = vpop.f32.mrb[0].mxu0
        %v1385 = vadd.f32 0.0, %v1384
        %v1386 = vpop.f32.mrb[0].mxu0
        %v1387 = vpop.f32.mrb[0].mxu0
        %v1388 = vpop.f32.mrb[0].mxu0
        %1389 = vdwg.mxu0
        %v1390 = vrcp.pop %v1340
        %v1391 = vmul.f32 %v1385, %v1390
        %1393 = vrot.lane.b32.xlu0 %v1391, 24
        %v1394 = vpop.permute.xlu0 %1393
        %vm1396 = vcmask 261312
        %1397 = vst.msk [vmem:[#allocation3] sm:$0xff] %vm1396, %v1394
        %v1398 = vld [vmem:[#allocation3] sm:$0xff]
        %v1399 = vpack.c.bf16 %v1398, %v1398
        %v1400 = vld [vmem:[#allocation15] sm:$0xf]
        %v1401 = vld [vmem:[#allocation15 + $0x4] sm:$0xf]
        %v1402 = vld [vmem:[#allocation15 + $0x8] sm:$0xf]
        %v1403 = vld [vmem:[#allocation15 + $0xc] sm:$0xf]
        %v1404 = vld [vmem:[#allocation16] sm:$0x1]
        %v1406 = vlaneseq
        %v1407 = vshrl.u32 %v1406, 7
        %v1408 = vsub.s32 0, %v1407
        %v1409 = vrot.slane %v1404, %v1408
        %v1415 = vunpack.c.l.b16 %v1400
        %v1416 = vunpack.c.l.b16 %v1401
        %v1417 = vunpack.c.l.b16 %v1402
        %v1418 = vunpack.c.l.b16 %v1403
        %v1419 = vpack.c.b16 %v1416, %v1415
        %v1420 = vpack.c.b16 %v1418, %v1417
        %v1424 = vsel %vm818, %v1399, 0
        %1426 = vmatprep.subr.bf16.mxu0 0
        %1427 = vmatpush1.bf16.msra.mxu0 %v1419
        %1428 = vmatprep.subr.bf16.mxu0 0
        %1429 = vmatpush1.bf16.msra.mxu0 %v1420
        %1430 = vmatprep.subr.bf16.mxu0 0
        %1431 = vmatpush1.bf16.msra.mxu0 0
        %1432 = vmatprep.subr.bf16.mxu0 0
        %1433 = vmatpush1.bf16.msra.mxu0 0
        %1434 = vmatprep.subr.bf16.mxu0 0
        %1435 = vmatpush1.bf16.msra.mxu0 0
        %1436 = vmatprep.subr.bf16.mxu0 0
        %1437 = vmatpush1.bf16.msra.mxu0 0
        %1438 = vmatprep.subr.bf16.mxu0 0
        %1439 = vmatpush1.bf16.msra.mxu0 0
        %1440 = vmatprep.subr.bf16.mxu0 0
        %1441 = vmatpush1.bf16.msra.mxu0 0
        %1442 = vmatprep.subr.bf16.mxu0 0
        %1443 = vmatpush1.bf16.msra.mxu0 0
        %1444 = vmatprep.subr.bf16.mxu0 0
        %1445 = vmatpush1.bf16.msra.mxu0 0
        %1446 = vmatprep.subr.bf16.mxu0 0
        %1447 = vmatpush1.bf16.msra.mxu0 0
        %1448 = vmatprep.subr.bf16.mxu0 0
        %1449 = vmatpush1.bf16.msra.mxu0 0
        %1450 = vmatprep.subr.bf16.mxu0 0
        %1451 = vmatpush1.bf16.msra.mxu0 0
        %1452 = vmatprep.subr.bf16.mxu0 0
        %1453 = vmatpush1.bf16.msra.mxu0 0
        %1454 = vmatprep.subr.bf16.mxu0 0
        %1455 = vmatpush1.bf16.msra.mxu0 0
        %1456 = vmatprep.subr.bf16.mxu0 0
        %1457 = vmatpush1.bf16.msra.mxu0 0
        %1458 = vmatprep.mubr.bf16.mxu0 0
        %1459 = vmatmul.mubr.bf16.gmra.mrb[0].mxu0 %v1424
        %v1460 = vpop.f32.mrb[0].mxu0
        %v1461 = vadd.f32 %v1409, %v1460
        %v1462 = vpop.f32.mrb[0].mxu0
        %v1463 = vpop.f32.mrb[0].mxu0
        %v1464 = vpop.f32.mrb[0].mxu0
        %1465 = vdwg.mxu0
        %v1466 = vadd.f32 %v817, %v1461
        %v1467 = vld [vmem:[#allocation9] sm:$0x1]
        %v1468 = vld [vmem:[#allocation10] sm:$0x1]
        %v1469 = vsel %vm818, %v1466, 0.0
        %1470 = vadd.xlane.f32.xlu0 %v1469
        %v1471 = vpop.xlane.xlu0 %1470
        %v1472 = vmul.f32 %v1471, %v822
        %v1473 = vsub.f32 %v1466, %v1472
        %v1474 = vmul.f32 %v1473, %v1473
        %v1475 = vsel %vm818, %v1474, 0.0
        %1476 = vadd.xlane.f32.xlu0 %v1475
        %v1477 = vpop.xlane.xlu0 %1476
        %v1478 = vmul.f32 %v1477, %v822
        %v1479 = vadd.f32 %v1478, 1e-05
        %v1480 = vrsqrt.pop %v1479
        %v1481 = vmul.f32 %v1473, %v1480
        %v1483 = vlaneseq
        %v1484 = vshrl.u32 %v1483, 7
        %v1485 = vsub.s32 0, %v1484
        %v1486 = vrot.slane %v1467, %v1485
        %v1488 = vmul.f32 %v1481, %v1486
        %v1490 = vlaneseq
        %v1491 = vshrl.u32 %v1490, 7
        %v1492 = vsub.s32 0, %v1491
        %v1493 = vrot.slane %v1468, %v1492
        %v1495 = vadd.f32 %v1488, %v1493
        %v1496 = vpack.c.bf16 %v1495, %v1495
        %v1497 = vld [vmem:[%s13] sm:$0xf]
        %v1498 = vld [vmem:[%s13 + $0x4] sm:$0xf]
        %v1499 = vld [vmem:[%s13 + $0x8] sm:$0xf]
        %v1500 = vld [vmem:[%s13 + $0xc] sm:$0xf]
        %v1501 = vld [vmem:[%s14] sm:$0x1]
        %v1503 = vlaneseq
        %v1504 = vshrl.u32 %v1503, 7
        %v1505 = vsub.s32 0, %v1504
        %v1506 = vrot.slane %v1501, %v1505
        %v1512 = vunpack.c.l.b16 %v1497
        %v1513 = vunpack.c.l.b16 %v1498
        %v1514 = vunpack.c.l.b16 %v1499
        %v1515 = vunpack.c.l.b16 %v1500
        %v1516 = vpack.c.b16 %v1513, %v1512
        %v1517 = vpack.c.b16 %v1515, %v1514
        %v1521 = vsel %vm818, %v1496, 0
        %1523 = vmatprep.subr.bf16.mxu0 0
        %1524 = vmatpush1.bf16.msra.mxu0 %v1516
        %1525 = vmatprep.subr.bf16.mxu0 0
        %1526 = vmatpush1.bf16.msra.mxu0 %v1517
        %1527 = vmatprep.subr.bf16.mxu0 0
        %1528 = vmatpush1.bf16.msra.mxu0 0
        %1529 = vmatprep.subr.bf16.mxu0 0
        %1530 = vmatpush1.bf16.msra.mxu0 0
        %1531 = vmatprep.subr.bf16.mxu0 0
        %1532 = vmatpush1.bf16.msra.mxu0 0
        %1533 = vmatprep.subr.bf16.mxu0 0
        %1534 = vmatpush1.bf16.msra.mxu0 0
        %1535 = vmatprep.subr.bf16.mxu0 0
        %1536 = vmatpush1.bf16.msra.mxu0 0
        %1537 = vmatprep.subr.bf16.mxu0 0
        %1538 = vmatpush1.bf16.msra.mxu0 0
        %1539 = vmatprep.subr.bf16.mxu0 0
        %1540 = vmatpush1.bf16.msra.mxu0 0
        %1541 = vmatprep.subr.bf16.mxu0 0
        %1542 = vmatpush1.bf16.msra.mxu0 0
        %1543 = vmatprep.subr.bf16.mxu0 0
        %1544 = vmatpush1.bf16.msra.mxu0 0
        %1545 = vmatprep.subr.bf16.mxu0 0
        %1546 = vmatpush1.bf16.msra.mxu0 0
        %1547 = vmatprep.subr.bf16.mxu0 0
        %1548 = vmatpush1.bf16.msra.mxu0 0
        %1549 = vmatprep.subr.bf16.mxu0 0
        %1550 = vmatpush1.bf16.msra.mxu0 0
        %1551 = vmatprep.subr.bf16.mxu0 0
        %1552 = vmatpush1.bf16.msra.mxu0 0
        %1553 = vmatprep.subr.bf16.mxu0 0
        %1554 = vmatpush1.bf16.msra.mxu0 0
        %1555 = vmatprep.mubr.bf16.mxu0 0
        %1556 = vmatmul.mubr.bf16.gmra.mrb[0].mxu0 %v1521
        %v1557 = vpop.f32.mrb[0].mxu0
        %v1558 = vadd.f32 %v1506, %v1557
        %v1559 = vpop.f32.mrb[0].mxu0
        %v1560 = vpop.f32.mrb[0].mxu0
        %v1561 = vpop.f32.mrb[0].mxu0
        %1562 = vdwg.mxu0
        %v1563 = vmax.f32 %v1558, 0.0
        %v1564 = vpack.c.bf16 %v1563, %v1563
        %v1565 = vld [vmem:[%s15] sm:$0xf]
        %v1566 = vld [vmem:[%s15 + $0x4] sm:$0xf]
        %v1567 = vld [vmem:[%s15 + $0x8] sm:$0xf]
        %v1568 = vld [vmem:[%s15 + $0xc] sm:$0xf]
        %v1569 = vld [vmem:[%s15 + $0x10] sm:$0xf]
        %v1570 = vld [vmem:[%s15 + $0x14] sm:$0xf]
        %v1571 = vld [vmem:[%s15 + $0x18] sm:$0xf]
        %v1572 = vld [vmem:[%s15 + $0x1c] sm:$0xf]
        %v1573 = vld [vmem:[%s16] sm:$0x1]
        %v1575 = vlaneseq
        %v1576 = vshrl.u32 %v1575, 7
        %v1577 = vsub.s32 0, %v1576
        %v1578 = vrot.slane %v1573, %v1577
        %v1588 = vunpack.c.l.b16 %v1565
        %v1589 = vunpack.c.l.b16 %v1566
        %v1590 = vunpack.c.l.b16 %v1567
        %v1591 = vunpack.c.l.b16 %v1568
        %v1592 = vunpack.c.l.b16 %v1569
        %v1593 = vunpack.c.l.b16 %v1570
        %v1594 = vunpack.c.l.b16 %v1571
        %v1595 = vunpack.c.l.b16 %v1572
        %v1596 = vpack.c.b16 %v1589, %v1588
        %v1597 = vpack.c.b16 %v1591, %v1590
        %v1598 = vpack.c.b16 %v1593, %v1592
        %v1599 = vpack.c.b16 %v1595, %v1594
        %vm1604 = vcmask 523264
        %v1606 = vsel %vm1604, %v1564, 0
        %1608 = vmatprep.subr.bf16.mxu0 0
        %1609 = vmatpush1.bf16.msra.mxu0 %v1596
        %1610 = vmatprep.subr.bf16.mxu0 0
        %1611 = vmatpush1.bf16.msra.mxu0 %v1597
        %1612 = vmatprep.subr.bf16.mxu0 0
        %1613 = vmatpush1.bf16.msra.mxu0 %v1598
        %1614 = vmatprep.subr.bf16.mxu0 0
        %1615 = vmatpush1.bf16.msra.mxu0 %v1599
        %1616 = vmatprep.subr.bf16.mxu0 0
        %1617 = vmatpush1.bf16.msra.mxu0 0
        %1618 = vmatprep.subr.bf16.mxu0 0
        %1619 = vmatpush1.bf16.msra.mxu0 0
        %1620 = vmatprep.subr.bf16.mxu0 0
        %1621 = vmatpush1.bf16.msra.mxu0 0
        %1622 = vmatprep.subr.bf16.mxu0 0
        %1623 = vmatpush1.bf16.msra.mxu0 0
        %1624 = vmatprep.subr.bf16.mxu0 0
        %1625 = vmatpush1.bf16.msra.mxu0 0
        %1626 = vmatprep.subr.bf16.mxu0 0
        %1627 = vmatpush1.bf16.msra.mxu0 0
        %1628 = vmatprep.subr.bf16.mxu0 0
        %1629 = vmatpush1.bf16.msra.mxu0 0
        %1630 = vmatprep.subr.bf16.mxu0 0
        %1631 = vmatpush1.bf16.msra.mxu0 0
        %1632 = vmatprep.subr.bf16.mxu0 0
        %1633 = vmatpush1.bf16.msra.mxu0 0
        %1634 = vmatprep.subr.bf16.mxu0 0
        %1635 = vmatpush1.bf16.msra.mxu0 0
        %1636 = vmatprep.subr.bf16.mxu0 0
        %1637 = vmatpush1.bf16.msra.mxu0 0
        %1638 = vmatprep.subr.bf16.mxu0 0
        %1639 = vmatpush1.bf16.msra.mxu0 0
        %1640 = vmatprep.mubr.bf16.mxu0 0
        %1641 = vmatmul.mubr.bf16.gmra.mrb[0].mxu0 %v1606
        %v1642 = vpop.f32.mrb[0].mxu0
        %v1643 = vadd.f32 %v1578, %v1642
        %v1644 = vpop.f32.mrb[0].mxu0
        %v1645 = vpop.f32.mrb[0].mxu0
        %v1646 = vpop.f32.mrb[0].mxu0
        %1647 = vdwg.mxu0
        %v1648 = vadd.f32 %v1466, %v1643
        %1649 = vst.msk [vmem:[%s698] sm:$0xff] %vm818, %v1648
        %s1650 = sand.u32 %s434, 1
        %s1651 = scalar_lea.sflag [#allocation6], %s1650
        %s1652 = sand.u32 %s434, 1
        %s1653 = smul.addr %s1652, 8
        %s1654 = scalar_lea.vmem [#allocation18], %s1653
        // Predicated region
        $region125: #{tpu_custom_call.1} parent=87 // pred_check
          %p1655 = pneg %p444
        $region126: #{tpu_custom_call.1} parent=87 // pred_check_branch
          %1657 = sbr.rel (%p1655) target = $region128
        $region127: #{tpu_custom_call.1} parent=87 // pred_region
          %s1659 = ssub.s32 128, 128
          %1660 = vsyncadd %s1651, %s1659
          %s1661 = sadd.s32 %s43, %s42
          %s1662 = smul.addr %s1661, 128
          %s1663 = scalar_lea.hbm %s17, %s1662
          %s1665 = sshll.u32 %s1654, 4
          %s1666 = int_to_ptr.vmem [resolvable:$true] %s1665
          %1668 = dma.vmem_to_hbm [thread:$0]  %s1666, 128, %s1663, %s1651
        $region128: #{tpu_custom_call.1} parent=87 // pred_fallthru
          _
      $region88: #{tpu_custom_call.1} parent=5 // pred_fallthru
        _
      %p1669 = scmp.le.s32.totalorder 2, %s33
      // Predicated region
      $region129: #{tpu_custom_call.1} parent=5 // pred_check
        %p1670 = pneg %p1669
      $region130: #{tpu_custom_call.1} parent=5 // pred_check_branch
        %1672 = sbr.rel (%p1670) target = $region132
      $region131: #{tpu_custom_call.1} parent=5 // pred_region
        %s1673 = ssub.s32 %s33, 2
        // Predicated region
        $region133: #{tpu_custom_call.1} parent=131 // pred_check
          %p1674 = pneg %p450
        $region134: #{tpu_custom_call.1} parent=131 // pred_check_branch
          %1676 = sbr.rel (%p1674) target = $region136
        $region135: #{tpu_custom_call.1} parent=131 // pred_region
          %s1677 = sand.u32 %s435, 1
          %s1678 = scalar_lea.sflag [#allocation6], %s1677
          %s1679 = sand.u32 %s435, 1
          %s1680 = smul.addr %s1679, 8
          %s1681 = scalar_lea.vmem [#allocation18], %s1680
          %1682 = dma.done %s1678, 128
        $region136: #{tpu_custom_call.1} parent=131 // pred_fallthru
          _
      $region132: #{tpu_custom_call.1} parent=5 // pred_fallthru
        _
    $region6: #{tpu_custom_call.1} parent=1 // loop_footer
      %s37 = sadd.s32 1, %s33
    $region7: #{tpu_custom_call.1} parent=1 // loop_footer_branch
      %32 = sbr.rel target = $region3
    $region8: #{tpu_custom_call.1} parent=1 // loop_exit
      _
    %1683 = vsyncpa [#allocation5], 1
    %s1684 = scalar_lea.sflag [#allocation5], 1
    %1685 = vsyncpa %s1684, 1
    %1686 = vsyncpa [#allocation8], 1
    %1687 = vsyncpa [#allocation11], 1
    %1688 = vsyncpa [#allocation14], 1
    %1689 = vsyncpa [#allocation17], 1
    %1690 = vsyncpa [#allocation6], 1
    %s1691 = scalar_lea.sflag [#allocation6], 1
    %1692 = vsyncpa %s1691, 1

</llo_original>
